<compile_context>
chip_gen: v7x
topology: tpu7x:2x2x1
jax: 0.10.0
libtpu: 0.0.40
codegen_flags: <defaults>
</compile_context>

<pallas_src>
import functools

import numpy as np

import jax
import jax.numpy as jnp
from jax.experimental import pallas as pl
from jax.experimental.pallas import tpu as pltpu


def _round_up(x, m):
    return ((x + m - 1) // m) * m


def _make_kernel(*, alpha, temp, cathode_weight, b_true, e_dim, tile_b,
                 ragged, has_phys):
    alpha = float(alpha)
    temp = float(temp)
    cathode_weight = float(cathode_weight)

    # Pre-weighted so a single (1,1) resident accumulator suffices.
    w_em = (1.0 - alpha) / float(b_true * e_dim)   # MSE over all B*E elements
    w_tot = alpha / float(b_true)                  # MSE over B elements
    w_cons = 1.0 / float(b_true)                   # mean over B rows

    nt_dims = (((1,), (1,)), ((), ()))             # contract minor dims (A @ B^T)

    def kernel(*refs):
        if has_phys:
            (pe_ref, te_ref, pt_ref, tt_ref, wrow_ref, cv_ref, wsel_ref,
             o_ref, s1_ref, s2_ref, g_ref, cce_ref, ccv_ref) = refs
        else:
            pe_ref, te_ref, pt_ref, tt_ref, wrow_ref, o_ref = refs

        i = pl.program_id(0)
        last = pl.num_programs(0) - 1

        @pl.when(i == 0)
        def _init():
            o_ref[...] = jnp.zeros_like(o_ref)
            if has_phys:
                s1_ref[...] = jnp.zeros_like(s1_ref)
                s2_ref[...] = jnp.zeros_like(s2_ref)
                g_ref[...] = jnp.zeros_like(g_ref)
                cce_ref[...] = jnp.zeros_like(cce_ref)
                ccv_ref[...] = jnp.zeros_like(ccv_ref)

        pe = pe_ref[...].astype(jnp.float32)        # (tile_b, E)
        te = te_ref[...].astype(jnp.float32)        # (tile_b, E)
        pt = pt_ref[...].astype(jnp.float32)        # (1, tile_b)  lane-dense
        tt = tt_ref[...].astype(jnp.float32)        # (1, tile_b)

        if ragged:
            row_ok = (jax.lax.broadcasted_iota(jnp.int32, (tile_b, 1), 0)
                      + i * tile_b) < b_true                       # (tile_b, 1)
            lane_ok = (jax.lax.broadcasted_iota(jnp.int32, (1, tile_b), 1)
                       + i * tile_b) < b_true                      # (1, tile_b)

        # ---- emission MSE partial (masked on the ragged tail) ----
        d_em = pe - te
        sq_em = d_em * d_em
        if ragged:
            sq_em = jnp.where(row_ok, sq_em, 0.0)
        em_sum = jnp.sum(sq_em, keepdims=True)                     # (1, 1)

        # ---- total MSE partial (lane-dense) ----
        d_t = pt - tt
        sq_t = d_t * d_t
        if ragged:
            sq_t = jnp.where(lane_ok, sq_t, 0.0)
        tot_sum = jnp.sum(sq_t, keepdims=True)                     # (1, 1)

        # ---- consistency partial: per-row emission sums in LANE orientation
        #      via a padded ones-row matmul (ones(8,E) @ pe^T), row 0 valid ----
        row_sums = jax.lax.dot_general(
            wrow_ref[...].astype(jnp.float32), pe, nt_dims,
            precision=jax.lax.Precision.HIGHEST,
            preferred_element_type=jnp.float32)[0:1, :]            # (1, tile_b)
        cons = jnp.abs(pt - row_sums) / (jnp.abs(pt) + temp)
        if ragged:
            cons = jnp.where(lane_ok, cons, 0.0)
        cons_sum = jnp.sum(cons, keepdims=True)                    # (1, 1)

        o_ref[...] += w_em * em_sum + w_tot * tot_sum + w_cons * cons_sum

        # ---- streamed cathode (physical) constraint ----
        if has_phys:
            cv = cv_ref[...].astype(jnp.float32)                   # (1, tile_b)
            # ce[k, r] = pe[r, idxs[k]]; padding rows of the selector are all
            # zero and contribute exactly 0 to every statistic below.
            ce = jax.lax.dot_general(
                wsel_ref[...].astype(jnp.float32), pe, nt_dims,
                precision=jax.lax.Precision.HIGHEST,
                preferred_element_type=jnp.float32)                # (n_sel, tile_b)

            u = ce / (cv + 1e-6)
            u2 = u * u
            if ragged:
                u = jnp.where(lane_ok, u, 0.0)
                u2 = jnp.where(lane_ok, u2, 0.0)
            s1_ref[...] += jnp.sum(u, axis=1, keepdims=True)       # (n_sel, 1)
            s2_ref[...] += jnp.sum(u2, axis=1, keepdims=True)      # (n_sel, 1)

            if b_true >= 2:
                # In-tile consecutive pairs (lane-axis diff).
                d_ce = ce[:, 1:] - ce[:, :-1]                      # (n_sel, tile_b-1)
                d_cv = cv[:, 1:] - cv[:, :-1]                      # (1, tile_b-1)
                g = jnp.maximum(-(d_ce * d_cv), 0.0)
                if ragged:
                    pair_ok = (jax.lax.broadcasted_iota(
                        jnp.int32, (1, tile_b - 1), 1) + i * tile_b) < (b_true - 1)
                    g = jnp.where(pair_ok, g, 0.0)
                g_ref[...] += jnp.sum(g, axis=1, keepdims=True)    # (n_sel, 1)

                # Cross-tile pair: previous tile's last row vs this tile's row 0.
                ce_first = ce[:, 0:1]
                cv_first = cv[:, 0:1]
                gc = jnp.maximum(-((ce_first - cce_ref[...])
                                   * (cv_first - ccv_ref[...])), 0.0)

                @pl.when(i > 0)
                def _cross():
                    g_ref[...] += gc

                # Carry this tile's last row for the next tile (unused on last).
                cce_ref[...] = ce[:, tile_b - 1:tile_b]
                ccv_ref[...] = cv[:, tile_b - 1:tile_b]

            @pl.when(i == last)
            def _finalize():
                mean_u = s1_ref[...] / float(b_true)               # (n_sel, 1)
                var = s2_ref[...] / float(b_true) - mean_u * mean_u
                var_loss = var / (mean_u + 1e-6)
                if b_true >= 2:
                    grad_loss = g_ref[...] / float(b_true - 1)
                else:
                    grad_loss = jnp.zeros_like(var_loss)
                physical = (0.5 * cathode_weight) * jnp.sum(
                    var_loss + grad_loss, keepdims=True)           # (1, 1)
                o_ref[...] += physical

    return kernel


@functools.partial(jax.jit,
                   static_argnames=("alpha", "temp", "cathode_weight",
                                    "emission_indices", "max_tile_rows"))
def physics_constrained_loss(pred_emissions, pred_total,
                             true_emissions, true_total,
                             cathode_values=None,
                             *, alpha=0.7, temp=1.0, cathode_weight=3.0,
                             emission_indices=(), max_tile_rows=None):
    pe = jnp.asarray(pred_emissions)
    te = jnp.asarray(true_emissions)
    b, e = pe.shape
    pt = jnp.reshape(jnp.asarray(pred_total), (1, b))     # lane-dense rows
    tt = jnp.reshape(jnp.asarray(true_total), (1, b))

    idxs = tuple(int(i) for i in (emission_indices or ()))
    has_phys = (cathode_values is not None) and len(idxs) > 0
    n_idx = len(idxs) if has_phys else 0
    n_sel = _round_up(max(n_idx, 1), 8) if has_phys else 0
    n_aux = 3 if has_phys else 2

    # ---- VMEM-budgeted tile: lane-padding- and dtype-aware accounting of the
    # double-buffered (tile_b, E) streams, (1, tile_b) aux blocks and in-kernel
    # f32 temporaries; target ~24 MiB footprint (safe on v5e/v6e/v7x). ----
    lane_e = _round_up(e, 128)
    in_itemsize = pe.dtype.itemsize
    aux_itemsize = pt.dtype.itemsize
    per_row = (2 * 2 * lane_e * in_itemsize        # pe/te, double-buffered
               + 4 * lane_e * 4                    # f32 value temporaries
               + n_aux * 2 * 8 * aux_itemsize)     # (1, tile_b) blocks, 8-sublane pad
    budget = (24 - 3) * 1024 * 1024
    cap = max(128, min((budget // per_row) // 128 * 128, 32 * 1024))
    if max_tile_rows is not None:
        cap = max(128, min(cap, (int(max_tile_rows) // 128) * 128))
    tile_b = b if b <= cap else cap                # single tile may be ragged-free
    num_tiles = pl.cdiv(b, tile_b)
    ragged = (b % tile_b) != 0

    # ---- tiny static matmul operands: ones row (row sums) + one-hot selectors
    # (cathode column gather), both padded to 8 rows for clean MXU shapes. ----
    w_row = np.zeros((8, e), np.float32)
    w_row[0, :] = 1.0

    in_specs = [
        pl.BlockSpec((tile_b, e), lambda i: (i, 0)),
        pl.BlockSpec((tile_b, e), lambda i: (i, 0)),
        pl.BlockSpec((1, tile_b), lambda i: (0, i)),
        pl.BlockSpec((1, tile_b), lambda i: (0, i)),
        pl.BlockSpec((8, e), lambda i: (0, 0)),
    ]
    inputs = [pe, te, pt, tt, jnp.asarray(w_row)]
    scratch_shapes = []

    if has_phys:
        cv = jnp.reshape(jnp.asarray(cathode_values), (1, b))
        w_sel = np.zeros((n_sel, e), np.float32)
        for k, idx in enumerate(idxs):
            w_sel[k, idx] = 1.0
        inputs += [cv, jnp.asarray(w_sel)]
        in_specs += [pl.BlockSpec((1, tile_b), lambda i: (0, i)),
                     pl.BlockSpec((n_sel, e), lambda i: (0, 0))]
        scratch_shapes = [
            pltpu.VMEM((n_sel, 1), jnp.float32),   # sum(u)
            pltpu.VMEM((n_sel, 1), jnp.float32),   # sum(u^2)
            pltpu.VMEM((n_sel, 1), jnp.float32),   # sum(relu(-dce*dcv))
            pltpu.VMEM((n_sel, 1), jnp.float32),   # carry: last ce of prev tile
            pltpu.VMEM((1, 1), jnp.float32),       # carry: last cv of prev tile
        ]

    est_vmem = per_row * tile_b + 3 * 1024 * 1024
    vmem_limit = int(min(max(est_vmem * 3 // 2, 16 * 1024 * 1024),
                         40 * 1024 * 1024))

    kernel = _make_kernel(alpha=alpha, temp=temp, cathode_weight=cathode_weight,
                          b_true=b, e_dim=e, tile_b=tile_b,
                          ragged=ragged, has_phys=has_phys)

    out = pl.pallas_call(
        kernel,
        grid=(num_tiles,),
        in_specs=in_specs,
        out_specs=pl.BlockSpec((1, 1), lambda i: (0, 0)),
        out_shape=jax.ShapeDtypeStruct((1, 1), jnp.float32),
        scratch_shapes=scratch_shapes,
        compiler_params=pltpu.CompilerParams(
            dimension_semantics=("arbitrary",),    # resident accumulator + carry
            vmem_limit_bytes=vmem_limit),
    )(*inputs)
    return out[0, 0]


def _reference_loss(pred_emissions, pred_total, true_emissions, true_total,
                    cathode_values, alpha, temp, cathode_weight, idxs):
    """Pure-JAX reference mirroring the PyTorch forward, for the sanity check."""
    pe = jnp.asarray(pred_emissions, jnp.float32)
    te = jnp.asarray(true_emissions, jnp.float32)
    b = pe.shape[0]
    pt = jnp.reshape(jnp.asarray(pred_total, jnp.float32), (b, 1))
    tt = jnp.reshape(jnp.asarray(true_total, jnp.float32), (b, 1))
    emission_loss = jnp.mean((pe - te) ** 2)
    total_loss = jnp.mean((pt - tt) ** 2)
    consistency = jnp.mean(jnp.abs(pt - jnp.sum(pe, axis=1, keepdims=True))
                           / (jnp.abs(pt) + temp))
    physical = 0.0
    if cathode_values is not None and idxs:
        cv = jnp.reshape(jnp.asarray(cathode_values, jnp.float32), (b, 1))
        for idx in idxs:
            ce = pe[:, idx:idx + 1]
            unit = ce / (cv + 1e-6)
            mu = jnp.mean(unit)
            var_l = jnp.mean(jnp.square(unit - mu) / (mu + 1e-6))
            grad_l = jnp.mean(jax.nn.relu(-(ce[1:] - ce[:-1]) * (cv[1:] - cv[:-1])))
            physical = physical + (var_l + grad_l) * 0.5
        physical = physical * cathode_weight
    return ((1 - alpha) * emission_loss + alpha * total_loss
            + consistency + physical)


if __name__ == "__main__":
    alpha, temp, cathode_weight = 0.7, 1.0, 3.0
    emission_indices = (0, 2)

    key_a, key_b = jax.random.split(jax.random.PRNGKey(0))

    def make(b, e, key):
        k1, k2, k3, k4, k5 = jax.random.split(key, 5)
        pe = jax.random.uniform(k1, (b, e), jnp.float32) * 2.0
        te = jax.random.uniform(k2, (b, e), jnp.float32) * 2.0
        pt = jax.random.uniform(k3, (b, 1), jnp.float32) * 10.0
        tt = jax.random.uniform(k4, (b, 1), jnp.float32) * 10.0
        cv = jax.random.uniform(k5, (b, 1), jnp.float32) + 0.5
        return pe, pt, te, tt, cv

    # 1) small single-tile path (B=20, E=8), with cathode constraint.
    pe, pt, te, tt, cv = make(20, 8, key_a)
    ref = _reference_loss(pe, pt, te, tt, cv, alpha, temp, cathode_weight,
                          emission_indices)
    got = jax.block_until_ready(physics_constrained_loss(
        pe, pt, te, tt, cv, alpha=alpha, temp=temp,
        cathode_weight=cathode_weight, emission_indices=emission_indices))
    assert jnp.allclose(got, ref, rtol=1e-5, atol=1e-5), (got, ref)

    # 2) no-cathode path (physical loss disabled).
    ref0 = _reference_loss(pe, pt, te, tt, None, alpha, temp, cathode_weight, ())
    got0 = jax.block_until_ready(physics_constrained_loss(
        pe, pt, te, tt, None, alpha=alpha, temp=temp,
        cathode_weight=cathode_weight, emission_indices=()))
    assert jnp.allclose(got0, ref0, rtol=1e-5, atol=1e-5), (got0, ref0)

    # 3) multi-tile ragged-tail path: B=300 with 128-row tiles -> 3 grid steps,
    #    masked tail, streamed cathode stats and the cross-tile gradient carry.
    pe, pt, te, tt, cv = make(300, 8, key_b)
    ref2 = _reference_loss(pe, pt, te, tt, cv, alpha, temp, cathode_weight,
                           emission_indices)
    got2 = jax.block_until_ready(physics_constrained_loss(
        pe, pt, te, tt, cv, alpha=alpha, temp=temp,
        cathode_weight=cathode_weight, emission_indices=emission_indices,
        max_tile_rows=128))
    assert jnp.allclose(got2, ref2, rtol=1e-5, atol=1e-5), (got2, ref2)

    print("KERNEL_OK")
</pallas_src>

<mosaic_0001>
module attributes {stable_mosaic.version = 11 : i64} {
  func.func @kernel(%arg0: i32, %arg1: memref<20x8xf32, #tpu.memory_space<vmem>>, %arg2: memref<20x8xf32, #tpu.memory_space<vmem>>, %arg3: memref<1x20xf32, #tpu.memory_space<vmem>>, %arg4: memref<1x20xf32, #tpu.memory_space<vmem>>, %arg5: memref<8x8xf32, #tpu.memory_space<vmem>>, %arg6: memref<1x20xf32, #tpu.memory_space<vmem>>, %arg7: memref<8x8xf32, #tpu.memory_space<vmem>>, %arg8: memref<1x1xf32, #tpu.memory_space<vmem>>, %arg9: memref<8x1xf32, #tpu.memory_space<vmem>>, %arg10: memref<8x1xf32, #tpu.memory_space<vmem>>, %arg11: memref<8x1xf32, #tpu.memory_space<vmem>>, %arg12: memref<8x1xf32, #tpu.memory_space<vmem>>, %arg13: memref<1x1xf32, #tpu.memory_space<vmem>>) attributes {dimension_semantics = [#tpu.dimension_semantics<arbitrary>], iteration_bounds = array<i64: 1>, scalar_prefetch = 0 : i64, scratch_operands = 5 : i64, tpu.core_type = #tpu.core_type<tc>, window_params = [{transform_indices = @transform_0, window_bounds = array<i64: 20, 8>}, {transform_indices = @transform_1, window_bounds = array<i64: 20, 8>}, {transform_indices = @transform_2, window_bounds = array<i64: 1, 20>}, {transform_indices = @transform_3, window_bounds = array<i64: 1, 20>}, {pipeline_mode = #tpu.pipeline_mode<synchronous>, transform_indices = @transform_4, window_bounds = array<i64: 8, 8>}, {transform_indices = @transform_5, window_bounds = array<i64: 1, 20>}, {pipeline_mode = #tpu.pipeline_mode<synchronous>, transform_indices = @transform_6, window_bounds = array<i64: 8, 8>}, {pipeline_mode = #tpu.pipeline_mode<synchronous>, transform_indices = @transform_7, window_bounds = array<i64: 1, 1>}]} {
    %c0_i32 = arith.constant 0 : i32
    %0 = arith.cmpi eq, %arg0, %c0_i32 : i32
    %1 = arith.extui %0 : i1 to i32
    %c0_i32_0 = arith.constant 0 : i32
    %2 = arith.cmpi ne, %1, %c0_i32_0 : i32
    scf.if %2 {
      %cst_58 = arith.constant 0.000000e+00 : f32
      %103 = vector.broadcast %cst_58 : f32 to vector<1x1xf32>
      %c0_59 = arith.constant 0 : index
      %c0_60 = arith.constant 0 : index
      %104 = vector.load %arg8[%c0_59, %c0_60] : memref<1x1xf32, #tpu.memory_space<vmem>>, vector<1x1xf32>
      tpu.vector_store %arg8[%c0_59, %c0_60], %103 {strides = array<i32>} : memref<1x1xf32, #tpu.memory_space<vmem>>, vector<1x1xf32>,
      %cst_61 = arith.constant 0.000000e+00 : f32
      %105 = vector.broadcast %cst_61 : f32 to vector<8x1xf32>
      %c0_62 = arith.constant 0 : index
      %c0_63 = arith.constant 0 : index
      %106 = vector.load %arg9[%c0_62, %c0_63] : memref<8x1xf32, #tpu.memory_space<vmem>>, vector<8x1xf32>
      tpu.vector_store %arg9[%c0_62, %c0_63], %105 {strides = array<i32>} : memref<8x1xf32, #tpu.memory_space<vmem>>, vector<8x1xf32>,
      %cst_64 = arith.constant 0.000000e+00 : f32
      %107 = vector.broadcast %cst_64 : f32 to vector<8x1xf32>
      %c0_65 = arith.constant 0 : index
      %c0_66 = arith.constant 0 : index
      %108 = vector.load %arg10[%c0_65, %c0_66] : memref<8x1xf32, #tpu.memory_space<vmem>>, vector<8x1xf32>
      tpu.vector_store %arg10[%c0_65, %c0_66], %107 {strides = array<i32>} : memref<8x1xf32, #tpu.memory_space<vmem>>, vector<8x1xf32>,
      %cst_67 = arith.constant 0.000000e+00 : f32
      %109 = vector.broadcast %cst_67 : f32 to vector<8x1xf32>
      %c0_68 = arith.constant 0 : index
      %c0_69 = arith.constant 0 : index
      %110 = vector.load %arg11[%c0_68, %c0_69] : memref<8x1xf32, #tpu.memory_space<vmem>>, vector<8x1xf32>
      tpu.vector_store %arg11[%c0_68, %c0_69], %109 {strides = array<i32>} : memref<8x1xf32, #tpu.memory_space<vmem>>, vector<8x1xf32>,
      %cst_70 = arith.constant 0.000000e+00 : f32
      %111 = vector.broadcast %cst_70 : f32 to vector<8x1xf32>
      %c0_71 = arith.constant 0 : index
      %c0_72 = arith.constant 0 : index
      %112 = vector.load %arg12[%c0_71, %c0_72] : memref<8x1xf32, #tpu.memory_space<vmem>>, vector<8x1xf32>
      tpu.vector_store %arg12[%c0_71, %c0_72], %111 {strides = array<i32>} : memref<8x1xf32, #tpu.memory_space<vmem>>, vector<8x1xf32>,
      %cst_73 = arith.constant 0.000000e+00 : f32
      %113 = vector.broadcast %cst_73 : f32 to vector<1x1xf32>
      %c0_74 = arith.constant 0 : index
      %c0_75 = arith.constant 0 : index
      %114 = vector.load %arg13[%c0_74, %c0_75] : memref<1x1xf32, #tpu.memory_space<vmem>>, vector<1x1xf32>
      tpu.vector_store %arg13[%c0_74, %c0_75], %113 {strides = array<i32>} : memref<1x1xf32, #tpu.memory_space<vmem>>, vector<1x1xf32>,
    } else {
    }
    %c0 = arith.constant 0 : index
    %c0_1 = arith.constant 0 : index
    %3 = vector.load %arg1[%c0, %c0_1] : memref<20x8xf32, #tpu.memory_space<vmem>>, vector<20x8xf32>
    %c0_2 = arith.constant 0 : index
    %c0_3 = arith.constant 0 : index
    %4 = vector.load %arg2[%c0_2, %c0_3] : memref<20x8xf32, #tpu.memory_space<vmem>>, vector<20x8xf32>
    %c0_4 = arith.constant 0 : index
    %c0_5 = arith.constant 0 : index
    %5 = vector.load %arg3[%c0_4, %c0_5] : memref<1x20xf32, #tpu.memory_space<vmem>>, vector<1x20xf32>
    %c0_6 = arith.constant 0 : index
    %c0_7 = arith.constant 0 : index
    %6 = vector.load %arg4[%c0_6, %c0_7] : memref<1x20xf32, #tpu.memory_space<vmem>>, vector<1x20xf32>
    %7 = arith.subf %3, %4 : vector<20x8xf32>
    %8 = arith.mulf %7, %7 : vector<20x8xf32>
    %9 = vector.shape_cast %8 : vector<20x8xf32> to vector<1x20x8xf32>
    %cst = arith.constant dense<0.000000e+00> : vector<1xf32>
    %10 = vector.multi_reduction <add>, %9, %cst [1, 2] : vector<1x20x8xf32> to vector<1xf32>
    %11 = vector.shape_cast %10 : vector<1xf32> to vector<1x1x1xf32>
    %12 = vector.extract %11[0, 0, 0] : f32 from vector<1x1x1xf32>
    %13 = vector.broadcast %12 : f32 to vector<1x1xf32>
    %14 = arith.subf %5, %6 : vector<1x20xf32>
    %15 = arith.mulf %14, %14 : vector<1x20xf32>
    %16 = vector.shape_cast %15 : vector<1x20xf32> to vector<1x1x20xf32>
    %cst_8 = arith.constant dense<0.000000e+00> : vector<1xf32>
    %17 = vector.multi_reduction <add>, %16, %cst_8 [1, 2] : vector<1x1x20xf32> to vector<1xf32>
    %18 = vector.shape_cast %17 : vector<1xf32> to vector<1x1x1xf32>
    %19 = vector.extract %18[0, 0, 0] : f32 from vector<1x1x1xf32>
    %20 = vector.broadcast %19 : f32 to vector<1x1xf32>
    %c0_9 = arith.constant 0 : index
    %c0_10 = arith.constant 0 : index
    %21 = vector.load %arg5[%c0_9, %c0_10] : memref<8x8xf32, #tpu.memory_space<vmem>>, vector<8x8xf32>
    %cst_11 = arith.constant dense<0.000000e+00> : vector<8x20xf32>
    %22 = tpu.matmul %21, %3, %cst_11 {dimension_numbers = #tpu.dot_dimension_numbers<[1], [1], [0], [0], [0, 0, 1, 0], [], []>, precision = #tpu.contract_precision<fp32>} : vector<8x8xf32>, vector<20x8xf32>, vector<8x20xf32> -> vector<8x20xf32>
    %23 = vector.extract_strided_slice %22 {offsets = [0, 0], sizes = [1, 20], strides = [1, 1]} : vector<8x20xf32> to vector<1x20xf32>
    %24 = arith.subf %5, %23 : vector<1x20xf32>
    %25 = math.absf %24 : vector<1x20xf32>
    %26 = math.absf %5 : vector<1x20xf32>
    %cst_12 = arith.constant 1.000000e+00 : f32
    %27 = vector.broadcast %cst_12 : f32 to vector<1x20xf32>
    %28 = arith.addf %26, %27 : vector<1x20xf32>
    %29 = arith.divf %25, %28 : vector<1x20xf32>
    %30 = vector.shape_cast %29 : vector<1x20xf32> to vector<1x1x20xf32>
    %cst_13 = arith.constant dense<0.000000e+00> : vector<1xf32>
    %31 = vector.multi_reduction <add>, %30, %cst_13 [1, 2] : vector<1x1x20xf32> to vector<1xf32>
    %32 = vector.shape_cast %31 : vector<1xf32> to vector<1x1x1xf32>
    %33 = vector.extract %32[0, 0, 0] : f32 from vector<1x1x1xf32>
    %34 = vector.broadcast %33 : f32 to vector<1x1xf32>
    %c0_14 = arith.constant 0 : index
    %c0_15 = arith.constant 0 : index
    %35 = vector.load %arg8[%c0_14, %c0_15] : memref<1x1xf32, #tpu.memory_space<vmem>>, vector<1x1xf32>
    %cst_16 = arith.constant 1.875000e-03 : f32
    %36 = vector.broadcast %cst_16 : f32 to vector<1x1xf32>
    %37 = arith.mulf %36, %13 : vector<1x1xf32>
    %cst_17 = arith.constant 3.500000e-02 : f32
    %38 = vector.broadcast %cst_17 : f32 to vector<1x1xf32>
    %39 = arith.mulf %38, %20 : vector<1x1xf32>
    %40 = arith.addf %37, %39 : vector<1x1xf32>
    %cst_18 = arith.constant 5.000000e-02 : f32
    %41 = vector.broadcast %cst_18 : f32 to vector<1x1xf32>
    %42 = arith.mulf %41, %34 : vector<1x1xf32>
    %43 = arith.addf %40, %42 : vector<1x1xf32>
    %44 = arith.addf %35, %43 : vector<1x1xf32>
    %c0_19 = arith.constant 0 : index
    %c0_20 = arith.constant 0 : index
    %45 = vector.load %arg8[%c0_19, %c0_20] : memref<1x1xf32, #tpu.memory_space<vmem>>, vector<1x1xf32>
    tpu.vector_store %arg8[%c0_19, %c0_20], %44 {strides = array<i32>} : memref<1x1xf32, #tpu.memory_space<vmem>>, vector<1x1xf32>,
    %c0_21 = arith.constant 0 : index
    %c0_22 = arith.constant 0 : index
    %46 = vector.load %arg6[%c0_21, %c0_22] : memref<1x20xf32, #tpu.memory_space<vmem>>, vector<1x20xf32>
    %c0_23 = arith.constant 0 : index
    %c0_24 = arith.constant 0 : index
    %47 = vector.load %arg7[%c0_23, %c0_24] : memref<8x8xf32, #tpu.memory_space<vmem>>, vector<8x8xf32>
    %cst_25 = arith.constant dense<0.000000e+00> : vector<8x20xf32>
    %48 = tpu.matmul %47, %3, %cst_25 {dimension_numbers = #tpu.dot_dimension_numbers<[1], [1], [0], [0], [0, 0, 1, 0], [], []>, precision = #tpu.contract_precision<fp32>} : vector<8x8xf32>, vector<20x8xf32>, vector<8x20xf32> -> vector<8x20xf32>
    %cst_26 = arith.constant 9.99999997E-7 : f32
    %49 = vector.broadcast %cst_26 : f32 to vector<1x20xf32>
    %50 = arith.addf %46, %49 : vector<1x20xf32>
    %51 = vector.broadcast %50 : vector<1x20xf32> to vector<8x20xf32>
    %52 = arith.divf %48, %51 : vector<8x20xf32>
    %53 = arith.mulf %52, %52 : vector<8x20xf32>
    %c0_27 = arith.constant 0 : index
    %c0_28 = arith.constant 0 : index
    %54 = vector.load %arg9[%c0_27, %c0_28] : memref<8x1xf32, #tpu.memory_space<vmem>>, vector<8x1xf32>
    %cst_29 = arith.constant dense<0.000000e+00> : vector<8xf32>
    %55 = vector.multi_reduction <add>, %52, %cst_29 [1] : vector<8x20xf32> to vector<8xf32>
    %56 = vector.shape_cast %55 : vector<8xf32> to vector<8x1xf32>
    %57 = arith.addf %54, %56 : vector<8x1xf32>
    %c0_30 = arith.constant 0 : index
    %c0_31 = arith.constant 0 : index
    %58 = vector.load %arg9[%c0_30, %c0_31] : memref<8x1xf32, #tpu.memory_space<vmem>>, vector<8x1xf32>
    tpu.vector_store %arg9[%c0_30, %c0_31], %57 {strides = array<i32>} : memref<8x1xf32, #tpu.memory_space<vmem>>, vector<8x1xf32>,
    %c0_32 = arith.constant 0 : index
    %c0_33 = arith.constant 0 : index
    %59 = vector.load %arg10[%c0_32, %c0_33] : memref<8x1xf32, #tpu.memory_space<vmem>>, vector<8x1xf32>
    %cst_34 = arith.constant dense<0.000000e+00> : vector<8xf32>
    %60 = vector.multi_reduction <add>, %53, %cst_34 [1] : vector<8x20xf32> to vector<8xf32>
    %61 = vector.shape_cast %60 : vector<8xf32> to vector<8x1xf32>
    %62 = arith.addf %59, %61 : vector<8x1xf32>
    %c0_35 = arith.constant 0 : index
    %c0_36 = arith.constant 0 : index
    %63 = vector.load %arg10[%c0_35, %c0_36] : memref<8x1xf32, #tpu.memory_space<vmem>>, vector<8x1xf32>
    tpu.vector_store %arg10[%c0_35, %c0_36], %62 {strides = array<i32>} : memref<8x1xf32, #tpu.memory_space<vmem>>, vector<8x1xf32>,
    %64 = vector.extract_strided_slice %48 {offsets = [0, 1], sizes = [8, 19], strides = [1, 1]} : vector<8x20xf32> to vector<8x19xf32>
    %65 = vector.extract_strided_slice %48 {offsets = [0, 0], sizes = [8, 19], strides = [1, 1]} : vector<8x20xf32> to vector<8x19xf32>
    %66 = arith.subf %64, %65 : vector<8x19xf32>
    %67 = vector.extract_strided_slice %46 {offsets = [0, 1], sizes = [1, 19], strides = [1, 1]} : vector<1x20xf32> to vector<1x19xf32>
    %68 = vector.extract_strided_slice %46 {offsets = [0, 0], sizes = [1, 19], strides = [1, 1]} : vector<1x20xf32> to vector<1x19xf32>
    %69 = arith.subf %67, %68 : vector<1x19xf32>
    %70 = vector.broadcast %69 : vector<1x19xf32> to vector<8x19xf32>
    %71 = arith.mulf %66, %70 : vector<8x19xf32>
    %cst_37 = arith.constant 0.000000e+00 : f32
    %72 = vector.broadcast %cst_37 : f32 to vector<8x19xf32>
    %73 = arith.subf %72, %71 : vector<8x19xf32>
    %cst_38 = arith.constant 0.000000e+00 : f32
    %74 = vector.broadcast %cst_38 : f32 to vector<8x19xf32>
    %75 = arith.maximumf %73, %74 : vector<8x19xf32>
    %c0_39 = arith.constant 0 : index
    %c0_40 = arith.constant 0 : index
    %76 = vector.load %arg11[%c0_39, %c0_40] : memref<8x1xf32, #tpu.memory_space<vmem>>, vector<8x1xf32>
    %cst_41 = arith.constant dense<0.000000e+00> : vector<8xf32>
    %77 = vector.multi_reduction <add>, %75, %cst_41 [1] : vector<8x19xf32> to vector<8xf32>
    %78 = vector.shape_cast %77 : vector<8xf32> to vector<8x1xf32>
    %79 = arith.addf %76, %78 : vector<8x1xf32>
    %c0_42 = arith.constant 0 : index
    %c0_43 = arith.constant 0 : index
    %80 = vector.load %arg11[%c0_42, %c0_43] : memref<8x1xf32, #tpu.memory_space<vmem>>, vector<8x1xf32>
    tpu.vector_store %arg11[%c0_42, %c0_43], %79 {strides = array<i32>} : memref<8x1xf32, #tpu.memory_space<vmem>>, vector<8x1xf32>,
    %81 = vector.extract_strided_slice %48 {offsets = [0, 0], sizes = [8, 1], strides = [1, 1]} : vector<8x20xf32> to vector<8x1xf32>
    %82 = vector.extract_strided_slice %46 {offsets = [0, 0], sizes = [1, 1], strides = [1, 1]} : vector<1x20xf32> to vector<1x1xf32>
    %c0_44 = arith.constant 0 : index
    %c0_45 = arith.constant 0 : index
    %83 = vector.load %arg12[%c0_44, %c0_45] : memref<8x1xf32, #tpu.memory_space<vmem>>, vector<8x1xf32>
    %84 = arith.subf %81, %83 : vector<8x1xf32>
    %c0_46 = arith.constant 0 : index
    %c0_47 = arith.constant 0 : index
    %85 = vector.load %arg13[%c0_46, %c0_47] : memref<1x1xf32, #tpu.memory_space<vmem>>, vector<1x1xf32>
    %86 = arith.subf %82, %85 : vector<1x1xf32>
    %87 = vector.broadcast %86 : vector<1x1xf32> to vector<8x1xf32>
    %88 = arith.mulf %84, %87 : vector<8x1xf32>
    %cst_48 = arith.constant 0.000000e+00 : f32
    %89 = vector.broadcast %cst_48 : f32 to vector<8x1xf32>
    %90 = arith.subf %89, %88 : vector<8x1xf32>
    %cst_49 = arith.constant 0.000000e+00 : f32
    %91 = vector.broadcast %cst_49 : f32 to vector<8x1xf32>
    %92 = arith.maximumf %90, %91 : vector<8x1xf32>
    %c0_i32_50 = arith.constant 0 : i32
    %93 = arith.cmpi sgt, %arg0, %c0_i32_50 : i32
    %94 = arith.extui %93 : i1 to i32
    %c0_i32_51 = arith.constant 0 : i32
    %95 = arith.cmpi ne, %94, %c0_i32_51 : i32
    scf.if %95 {
      %c0_58 = arith.constant 0 : index
      %c0_59 = arith.constant 0 : index
      %103 = vector.load %arg11[%c0_58, %c0_59] : memref<8x1xf32, #tpu.memory_space<vmem>>, vector<8x1xf32>
      %104 = arith.addf %103, %92 : vector<8x1xf32>
      %c0_60 = arith.constant 0 : index
      %c0_61 = arith.constant 0 : index
      %105 = vector.load %arg11[%c0_60, %c0_61] : memref<8x1xf32, #tpu.memory_space<vmem>>, vector<8x1xf32>
      tpu.vector_store %arg11[%c0_60, %c0_61], %104 {strides = array<i32>} : memref<8x1xf32, #tpu.memory_space<vmem>>, vector<8x1xf32>,
    } else {
    }
    %96 = vector.extract_strided_slice %48 {offsets = [0, 19], sizes = [8, 1], strides = [1, 1]} : vector<8x20xf32> to vector<8x1xf32>
    %c0_52 = arith.constant 0 : index
    %c0_53 = arith.constant 0 : index
    %97 = vector.load %arg12[%c0_52, %c0_53] : memref<8x1xf32, #tpu.memory_space<vmem>>, vector<8x1xf32>
    tpu.vector_store %arg12[%c0_52, %c0_53], %96 {strides = array<i32>} : memref<8x1xf32, #tpu.memory_space<vmem>>, vector<8x1xf32>,
    %98 = vector.extract_strided_slice %46 {offsets = [0, 19], sizes = [1, 1], strides = [1, 1]} : vector<1x20xf32> to vector<1x1xf32>
    %c0_54 = arith.constant 0 : index
    %c0_55 = arith.constant 0 : index
    %99 = vector.load %arg13[%c0_54, %c0_55] : memref<1x1xf32, #tpu.memory_space<vmem>>, vector<1x1xf32>
    tpu.vector_store %arg13[%c0_54, %c0_55], %98 {strides = array<i32>} : memref<1x1xf32, #tpu.memory_space<vmem>>, vector<1x1xf32>,
    %c0_i32_56 = arith.constant 0 : i32
    %100 = arith.cmpi eq, %arg0, %c0_i32_56 : i32
    %101 = arith.extui %100 : i1 to i32
    %c0_i32_57 = arith.constant 0 : i32
    %102 = arith.cmpi ne, %101, %c0_i32_57 : i32
    scf.if %102 {
      %c0_58 = arith.constant 0 : index
      %c0_59 = arith.constant 0 : index
      %103 = vector.load %arg9[%c0_58, %c0_59] : memref<8x1xf32, #tpu.memory_space<vmem>>, vector<8x1xf32>
      %cst_60 = arith.constant 2.000000e+01 : f32
      %104 = vector.broadcast %cst_60 : f32 to vector<8x1xf32>
      %105 = arith.divf %103, %104 : vector<8x1xf32>
      %c0_61 = arith.constant 0 : index
      %c0_62 = arith.constant 0 : index
      %106 = vector.load %arg10[%c0_61, %c0_62] : memref<8x1xf32, #tpu.memory_space<vmem>>, vector<8x1xf32>
      %cst_63 = arith.constant 2.000000e+01 : f32
      %107 = vector.broadcast %cst_63 : f32 to vector<8x1xf32>
      %108 = arith.divf %106, %107 : vector<8x1xf32>
      %109 = arith.mulf %105, %105 : vector<8x1xf32>
      %110 = arith.subf %108, %109 : vector<8x1xf32>
      %cst_64 = arith.constant 9.99999997E-7 : f32
      %111 = vector.broadcast %cst_64 : f32 to vector<8x1xf32>
      %112 = arith.addf %105, %111 : vector<8x1xf32>
      %113 = arith.divf %110, %112 : vector<8x1xf32>
      %c0_65 = arith.constant 0 : index
      %c0_66 = arith.constant 0 : index
      %114 = vector.load %arg11[%c0_65, %c0_66] : memref<8x1xf32, #tpu.memory_space<vmem>>, vector<8x1xf32>
      %cst_67 = arith.constant 1.900000e+01 : f32
      %115 = vector.broadcast %cst_67 : f32 to vector<8x1xf32>
      %116 = arith.divf %114, %115 : vector<8x1xf32>
      %117 = arith.addf %113, %116 : vector<8x1xf32>
      %118 = vector.shape_cast %117 : vector<8x1xf32> to vector<1x8x1xf32>
      %cst_68 = arith.constant dense<0.000000e+00> : vector<1xf32>
      %119 = vector.multi_reduction <add>, %118, %cst_68 [1, 2] : vector<1x8x1xf32> to vector<1xf32>
      %120 = vector.shape_cast %119 : vector<1xf32> to vector<1x1x1xf32>
      %121 = vector.extract %120[0, 0, 0] : f32 from vector<1x1x1xf32>
      %122 = vector.broadcast %121 : f32 to vector<1x1xf32>
      %cst_69 = arith.constant 1.500000e+00 : f32
      %123 = vector.broadcast %cst_69 : f32 to vector<1x1xf32>
      %124 = arith.mulf %123, %122 : vector<1x1xf32>
      %c0_70 = arith.constant 0 : index
      %c0_71 = arith.constant 0 : index
      %125 = vector.load %arg8[%c0_70, %c0_71] : memref<1x1xf32, #tpu.memory_space<vmem>>, vector<1x1xf32>
      %126 = arith.addf %125, %124 : vector<1x1xf32>
      %c0_72 = arith.constant 0 : index
      %c0_73 = arith.constant 0 : index
      %127 = vector.load %arg8[%c0_72, %c0_73] : memref<1x1xf32, #tpu.memory_space<vmem>>, vector<1x1xf32>
      tpu.vector_store %arg8[%c0_72, %c0_73], %126 {strides = array<i32>} : memref<1x1xf32, #tpu.memory_space<vmem>>, vector<1x1xf32>,
    } else {
    }
    return
  }
  func.func @transform_0(%arg0: i32) -> (i32, i32) {
    %c0_i32 = arith.constant 0 : i32
    %c0_i32_0 = arith.constant 0 : i32
    return %arg0, %c0_i32 : i32, i32
  }
  func.func @transform_1(%arg0: i32) -> (i32, i32) {
    %c0_i32 = arith.constant 0 : i32
    %c0_i32_0 = arith.constant 0 : i32
    return %arg0, %c0_i32 : i32, i32
  }
  func.func @transform_2(%arg0: i32) -> (i32, i32) {
    %c0_i32 = arith.constant 0 : i32
    %c0_i32_0 = arith.constant 0 : i32
    return %c0_i32, %arg0 : i32, i32
  }
  func.func @transform_3(%arg0: i32) -> (i32, i32) {
    %c0_i32 = arith.constant 0 : i32
    %c0_i32_0 = arith.constant 0 : i32
    return %c0_i32, %arg0 : i32, i32
  }
  func.func @transform_4(%arg0: i32) -> (i32, i32) {
    %c0_i32 = arith.constant 0 : i32
    %c0_i32_0 = arith.constant 0 : i32
    %c0_i32_1 = arith.constant 0 : i32
    return %c0_i32, %c0_i32_0 : i32, i32
  }
  func.func @transform_5(%arg0: i32) -> (i32, i32) {
    %c0_i32 = arith.constant 0 : i32
    %c0_i32_0 = arith.constant 0 : i32
    return %c0_i32, %arg0 : i32, i32
  }
  func.func @transform_6(%arg0: i32) -> (i32, i32) {
    %c0_i32 = arith.constant 0 : i32
    %c0_i32_0 = arith.constant 0 : i32
    %c0_i32_1 = arith.constant 0 : i32
    return %c0_i32, %c0_i32_0 : i32, i32
  }
  func.func @transform_7(%arg0: i32) -> (i32, i32) {
    %c0_i32 = arith.constant 0 : i32
    %c0_i32_0 = arith.constant 0 : i32
    %c0_i32_1 = arith.constant 0 : i32
    return %c0_i32, %c0_i32_0 : i32, i32
  }
}

</mosaic_0001>

<llo_original>
// kernel: physics_constrained_loss.1
$region0: #{physics_constrained_loss.1}
  #allocation0 [shape = 'u32[]', space=smem, size = 0x4, offset = 0x4, fixed_abs, tag = 'smem constant byte address 0x4 - core index']
  #allocation1 [shape = 'u32[144,128]{1,0:T(1,128)}', space=vmem, size = 0x12000, scoped, tag = 'internal scratch']
  #allocation2 [shape = 'f32[8,1]{1,0:T(8,128)}', space=vmem, size = 0x1000, scoped, tag = 'scratch operand']
  #allocation3 [shape = 'f32[8,1]{1,0:T(8,128)}', space=vmem, size = 0x1000, scoped, tag = 'scratch operand']
  #allocation4 [shape = 'f32[8,1]{1,0:T(8,128)}', space=vmem, size = 0x1000, scoped, tag = 'scratch operand']
  #allocation5 [shape = 'f32[8,1]{1,0:T(8,128)}', space=vmem, size = 0x1000, scoped, tag = 'scratch operand']
  #allocation6 [shape = 'f32[1,1]{1,0:T(1,128)}', space=vmem, size = 0x200, scoped, tag = 'scratch operand']
  %s0 = inlined_call_operand.vmem [shape: f32[20,8], index: 0, kind: input, shape index: {}]
  %s1 = inlined_call_operand.vmem [shape: f32[20,8], index: 1, kind: input, shape index: {}]
  %s2 = inlined_call_operand.vmem [shape: f32[1,20], index: 2, kind: input, shape index: {}]
  %s3 = inlined_call_operand.vmem [shape: f32[1,20], index: 3, kind: input, shape index: {}]
  %s4 = inlined_call_operand.vmem [shape: f32[8,8], index: 4, kind: input, shape index: {}]
  %s5 = inlined_call_operand.vmem [shape: f32[1,20], index: 5, kind: input, shape index: {}]
  %s6 = inlined_call_operand.vmem [shape: f32[8,8], index: 6, kind: input, shape index: {}]
  %s7 = inlined_call_operand.hbm [shape: f32[1,1], index: 7, kind: output, shape index: {}]
  %s8 = sld [smem:[#allocation0]]
  $region50: #{physics_constrained_loss.1} parent=0
    _
  %s10 = ssub.s32 1, %s8
  %s11 = scalar_select 0, %s10, %s8
  $region1: #{physics_constrained_loss.1} parent=0
    #allocation7 [shape = 'u8[512]{0}', space=vmem, size = 0x400, scoped, tag = 'output window, operand 0, single buffered']
    #allocation8 [shape = 's32[1]{0}', space=sflag, size = 0x4, scoped, tag = 'scoped memory for physics_constrained_loss.1']
    %12 = vsyncpa [#allocation8], 0
    // Predicated region
    $region2: #{physics_constrained_loss.1} parent=1 // pred_check
      _
    $region3: #{physics_constrained_loss.1} parent=1 // pred_check_branch
      %14 = sbr.rel (0) target = $region5
    $region4: #{physics_constrained_loss.1} parent=1 // pred_region
      _
    $region5: #{physics_constrained_loss.1} parent=1 // pred_fallthru
      _
    // Predicated region
    $region6: #{physics_constrained_loss.1} parent=1 // pred_check
      _
    $region7: #{physics_constrained_loss.1} parent=1 // pred_check_branch
      %16 = sbr.rel (0) target = $region9
    $region8: #{physics_constrained_loss.1} parent=1 // pred_region
      _
    $region9: #{physics_constrained_loss.1} parent=1 // pred_fallthru
      _
    // Predicated region
    $region10: #{physics_constrained_loss.1} parent=1 // pred_check
      _
    $region11: #{physics_constrained_loss.1} parent=1 // pred_check_branch
      %18 = sbr.rel (0) target = $region13
    $region12: #{physics_constrained_loss.1} parent=1 // pred_region
      _
    $region13: #{physics_constrained_loss.1} parent=1 // pred_fallthru
      _
    // Predicated region
    $region14: #{physics_constrained_loss.1} parent=1 // pred_check
      _
    $region15: #{physics_constrained_loss.1} parent=1 // pred_check_branch
      %20 = sbr.rel (0) target = $region17
    $region16: #{physics_constrained_loss.1} parent=1 // pred_region
      _
    $region17: #{physics_constrained_loss.1} parent=1 // pred_fallthru
      _
    // Predicated region
    $region18: #{physics_constrained_loss.1} parent=1 // pred_check
      _
    $region19: #{physics_constrained_loss.1} parent=1 // pred_check_branch
      %22 = sbr.rel (0) target = $region21
    $region20: #{physics_constrained_loss.1} parent=1 // pred_region
      _
    $region21: #{physics_constrained_loss.1} parent=1 // pred_fallthru
      _
    // Predicated region
    $region22: #{physics_constrained_loss.1} parent=1 // pred_check
      _
    $region23: #{physics_constrained_loss.1} parent=1 // pred_check_branch
      %24 = sbr.rel (0) target = $region25
    $region24: #{physics_constrained_loss.1} parent=1 // pred_region
      _
    $region25: #{physics_constrained_loss.1} parent=1 // pred_fallthru
      _
    // Predicated region
    $region26: #{physics_constrained_loss.1} parent=1 // pred_check
      _
    $region27: #{physics_constrained_loss.1} parent=1 // pred_check_branch
      %26 = sbr.rel (0) target = $region29
    $region28: #{physics_constrained_loss.1} parent=1 // pred_region
      _
    $region29: #{physics_constrained_loss.1} parent=1 // pred_fallthru
      _
    %p27 = scmp.eq.s32.totalorder 0, 0
    // Predicated region
    $region30: #{physics_constrained_loss.1} parent=1 // pred_check
      %p28 = pneg %p27
    $region31: #{physics_constrained_loss.1} parent=1 // pred_check_branch
      %30 = sbr.rel (%p28) target = $region33
    $region32: #{physics_constrained_loss.1} parent=1 // pred_region
      %vm31 = vcmask 0
      %32 = vst.msk [vmem:[#allocation7] sm:$0x1] %vm31, 0.0
      %vm33 = vcmask 7168
      %34 = vst.msk [vmem:[#allocation2] sm:$0xff] %vm33, 0.0
      %35 = vst.msk [vmem:[#allocation3] sm:$0xff] %vm33, 0.0
      %36 = vst.msk [vmem:[#allocation4] sm:$0xff] %vm33, 0.0
      %37 = vst.msk [vmem:[#allocation5] sm:$0xff] %vm33, 0.0
      %38 = vst.msk [vmem:[#allocation6] sm:$0x1] %vm31, 0.0
    $region33: #{physics_constrained_loss.1} parent=1 // pred_fallthru
      _
    %v39 = vld [vmem:[%s0] sm:$0xff]
    %v40 = vld [vmem:[%s0 + $0x8] sm:$0xff]
    %v41 = vld [vmem:[%s0 + $0x10] sm:$0xf]
    %v42 = vld [vmem:[%s1] sm:$0xff]
    %v43 = vld [vmem:[%s1 + $0x8] sm:$0xff]
    %v44 = vld [vmem:[%s1 + $0x10] sm:$0xf]
    %v45 = vld [vmem:[%s2] sm:$0x1]
    %v46 = vld [vmem:[%s3] sm:$0x1]
    %v47 = vsub.f32 %v39, %v42
    %v48 = vsub.f32 %v40, %v43
    %v49 = vsub.f32 %v41, %v44
    %v50 = vmul.f32 %v47, %v47
    %v51 = vmul.f32 %v48, %v48
    %v52 = vmul.f32 %v49, %v49
    %vm53 = vcmask 64512
    %v54 = vsel %vm53, %v50, 0.0
    %v55 = vsel %vm53, %v51, 0.0
    %v56 = vadd.f32 %v54, %v55
    %vm57 = vcmask 60416
    %v58 = vsel %vm57, %v52, 0.0
    %v59 = vadd.f32 %v56, %v58
    %60 = vadd.xlane.f32.xlu0 %v59
    %v61 = vpop.xlane.xlu0 %60
    %v62 = vrot.slane %v61, 4
    %v63 = vadd.f32 %v61, %v62
    %v64 = vrot.slane %v63, 2
    %v65 = vadd.f32 %v63, %v64
    %v66 = vrot.slane %v65, 1
    %v67 = vadd.f32 %v65, %v66
    %s68 = vtos %v67
    %v69 = vstv %s68
    %v70 = vsub.f32 %v45, %v46
    %v71 = vmul.f32 %v70, %v70
    %vm72 = vcmask 155648
    %v73 = vsel %vm72, %v71, 0.0
    %74 = vadd.xlane.f32.xlu0 %v73
    %v75 = vpop.xlane.xlu0 %74
    %v76 = vrot.slane %v75, 4
    %v77 = vadd.f32 %v75, %v76
    %v78 = vrot.slane %v77, 2
    %v79 = vadd.f32 %v77, %v78
    %v80 = vrot.slane %v79, 1
    %v81 = vadd.f32 %v79, %v80
    %s82 = vtos %v81
    %v83 = vstv %s82
    %v84 = vld [vmem:[%s4] sm:$0xff]
    %v86 = vsel %vm53, %v84, 0
    %v89 = vsel %vm53, %v39, 0
    %v92 = vsel %vm53, %v40, 0
    %v95 = vsel %vm53, %v41, 0
    %97 = vmatprep.subr.mxu0 0.0
    %v98 = vand.u32 %v89, 4294901760
    %99 = vmatpush1.xpose.msra.mxu0 %v98
    %100 = vmatprep.subr.mxu0 0.0
    %v101 = vand.u32 %v92, 4294901760
    %102 = vmatpush1.xpose.msra.mxu0 %v101
    %103 = vmatprep.subr.mxu0 0.0
    %v104 = vand.u32 %v95, 4294901760
    %105 = vmatpush1.xpose.msra.mxu0 %v104
    %106 = vmatprep.subr.mxu0 0.0
    %107 = vmatpush1.xpose.msra.mxu0 0.0
    %108 = vmatprep.subr.mxu0 0.0
    %109 = vmatpush1.xpose.msra.mxu0 0.0
    %110 = vmatprep.subr.mxu0 0.0
    %111 = vmatpush1.xpose.msra.mxu0 0.0
    %112 = vmatprep.subr.mxu0 0.0
    %113 = vmatpush1.xpose.msra.mxu0 0.0
    %114 = vmatprep.subr.mxu0 0.0
    %115 = vmatpush1.xpose.msra.mxu0 0.0
    %116 = vmatprep.subr.mxu0 0.0
    %117 = vmatpush1.xpose.msra.mxu0 0.0
    %118 = vmatprep.subr.mxu0 0.0
    %119 = vmatpush1.xpose.msra.mxu0 0.0
    %120 = vmatprep.subr.mxu0 0.0
    %121 = vmatpush1.xpose.msra.mxu0 0.0
    %122 = vmatprep.subr.mxu0 0.0
    %123 = vmatpush1.xpose.msra.mxu0 0.0
    %124 = vmatprep.subr.mxu0 0.0
    %125 = vmatpush1.xpose.msra.mxu0 0.0
    %126 = vmatprep.subr.mxu0 0.0
    %127 = vmatpush1.xpose.msra.mxu0 0.0
    %128 = vmatprep.subr.mxu0 0.0
    %129 = vmatpush1.xpose.msra.mxu0 0.0
    %130 = vmatprep.subr.mxu0 0.0
    %131 = vmatpush1.xpose.msra.mxu0 0.0
    %132 = vmatprep.subr.mxu0 0.0
    %133 = vmatpush1.xpose.msra.mxu0 0.0
    %134 = vmatprep.subr.mxu0 0.0
    %135 = vmatpush1.xpose.msra.mxu0 0.0
    %136 = vmatprep.subr.mxu0 0.0
    %137 = vmatpush1.xpose.msra.mxu0 0.0
    %138 = vmatprep.subr.mxu0 0.0
    %139 = vmatpush1.xpose.msra.mxu0 0.0
    %140 = vmatprep.subr.mxu0 0.0
    %141 = vmatpush1.xpose.msra.mxu0 0.0
    %142 = vmatprep.subr.mxu0 0.0
    %143 = vmatpush1.xpose.msra.mxu0 0.0
    %144 = vmatprep.subr.mxu0 0.0
    %145 = vmatpush1.xpose.msra.mxu0 0.0
    %146 = vmatprep.subr.mxu0 0.0
    %147 = vmatpush1.xpose.msra.mxu0 0.0
    %148 = vmatprep.subr.mxu0 0.0
    %149 = vmatpush1.xpose.msra.mxu0 0.0
    %150 = vmatprep.subr.mxu0 0.0
    %151 = vmatpush1.xpose.msra.mxu0 0.0
    %152 = vmatprep.subr.mxu0 0.0
    %153 = vmatpush1.xpose.msra.mxu0 0.0
    %154 = vmatprep.subr.mxu0 0.0
    %155 = vmatpush1.xpose.msra.mxu0 0.0
    %156 = vmatprep.subr.mxu0 0.0
    %157 = vmatpush1.xpose.msra.mxu0 0.0
    %158 = vmatprep.subr.mxu0 0.0
    %159 = vmatpush1.xpose.msra.mxu0 0.0
    %160 = vmatprep.subr.mxu0 0.0
    %161 = vmatpush1.xpose.msra.mxu0 0.0
    %162 = vmatprep.subr.mxu0 0.0
    %163 = vmatpush1.xpose.msra.mxu0 0.0
    %164 = vmatprep.mubr.f32.mxu0 0.0
    %v165 = vand.u32 %v86, 4294901760
    %v166 = vsub.f32 %v86, %v165
    %v167 = vand.u32 %v166, 4294901760
    %v168 = vsub.f32 %v166, %v167
    %v169 = vand.u32 %v168, 4294901760
    %170 = vmatmul.mubr.f32.gmra.mrb[0].mxu0 %v169
    %v171 = vpop.f32.mrb[0].mxu0
    %v172 = vadd.f32 0.0, %v171
    %v173 = vpop.f32.mrb[0].mxu0
    %174 = vdwg.mxu0
    %175 = vmatprep.subr.mxu0 0.0
    %v176 = vand.u32 %v89, 4294901760
    %v177 = vsub.f32 %v89, %v176
    %v178 = vand.u32 %v177, 4294901760
    %v179 = vsub.f32 %v177, %v178
    %v180 = vand.u32 %v179, 4294901760
    %181 = vmatpush1.xpose.msra.mxu0 %v180
    %182 = vmatprep.subr.mxu0 0.0
    %v183 = vand.u32 %v92, 4294901760
    %v184 = vsub.f32 %v92, %v183
    %v185 = vand.u32 %v184, 4294901760
    %v186 = vsub.f32 %v184, %v185
    %v187 = vand.u32 %v186, 4294901760
    %188 = vmatpush1.xpose.msra.mxu0 %v187
    %189 = vmatprep.subr.mxu0 0.0
    %v190 = vand.u32 %v95, 4294901760
    %v191 = vsub.f32 %v95, %v190
    %v192 = vand.u32 %v191, 4294901760
    %v193 = vsub.f32 %v191, %v192
    %v194 = vand.u32 %v193, 4294901760
    %195 = vmatpush1.xpose.msra.mxu0 %v194
    %196 = vmatprep.subr.mxu0 0.0
    %197 = vmatpush1.xpose.msra.mxu0 0.0
    %198 = vmatprep.subr.mxu0 0.0
    %199 = vmatpush1.xpose.msra.mxu0 0.0
    %200 = vmatprep.subr.mxu0 0.0
    %201 = vmatpush1.xpose.msra.mxu0 0.0
    %202 = vmatprep.subr.mxu0 0.0
    %203 = vmatpush1.xpose.msra.mxu0 0.0
    %204 = vmatprep.subr.mxu0 0.0
    %205 = vmatpush1.xpose.msra.mxu0 0.0
    %206 = vmatprep.subr.mxu0 0.0
    %207 = vmatpush1.xpose.msra.mxu0 0.0
    %208 = vmatprep.subr.mxu0 0.0
    %209 = vmatpush1.xpose.msra.mxu0 0.0
    %210 = vmatprep.subr.mxu0 0.0
    %211 = vmatpush1.xpose.msra.mxu0 0.0
    %212 = vmatprep.subr.mxu0 0.0
    %213 = vmatpush1.xpose.msra.mxu0 0.0
    %214 = vmatprep.subr.mxu0 0.0
    %215 = vmatpush1.xpose.msra.mxu0 0.0
    %216 = vmatprep.subr.mxu0 0.0
    %217 = vmatpush1.xpose.msra.mxu0 0.0
    %218 = vmatprep.subr.mxu0 0.0
    %219 = vmatpush1.xpose.msra.mxu0 0.0
    %220 = vmatprep.subr.mxu0 0.0
    %221 = vmatpush1.xpose.msra.mxu0 0.0
    %222 = vmatprep.subr.mxu0 0.0
    %223 = vmatpush1.xpose.msra.mxu0 0.0
    %224 = vmatprep.subr.mxu0 0.0
    %225 = vmatpush1.xpose.msra.mxu0 0.0
    %226 = vmatprep.subr.mxu0 0.0
    %227 = vmatpush1.xpose.msra.mxu0 0.0
    %228 = vmatprep.subr.mxu0 0.0
    %229 = vmatpush1.xpose.msra.mxu0 0.0
    %230 = vmatprep.subr.mxu0 0.0
    %231 = vmatpush1.xpose.msra.mxu0 0.0
    %232 = vmatprep.subr.mxu0 0.0
    %233 = vmatpush1.xpose.msra.mxu0 0.0
    %234 = vmatprep.subr.mxu0 0.0
    %235 = vmatpush1.xpose.msra.mxu0 0.0
    %236 = vmatprep.subr.mxu0 0.0
    %237 = vmatpush1.xpose.msra.mxu0 0.0
    %238 = vmatprep.subr.mxu0 0.0
    %239 = vmatpush1.xpose.msra.mxu0 0.0
    %240 = vmatprep.subr.mxu0 0.0
    %241 = vmatpush1.xpose.msra.mxu0 0.0
    %242 = vmatprep.subr.mxu0 0.0
    %243 = vmatpush1.xpose.msra.mxu0 0.0
    %244 = vmatprep.subr.mxu0 0.0
    %245 = vmatpush1.xpose.msra.mxu0 0.0
    %246 = vmatprep.subr.mxu0 0.0
    %247 = vmatpush1.xpose.msra.mxu0 0.0
    %248 = vmatprep.subr.mxu0 0.0
    %249 = vmatpush1.xpose.msra.mxu0 0.0
    %250 = vmatprep.subr.mxu0 0.0
    %251 = vmatpush1.xpose.msra.mxu0 0.0
    %252 = vmatprep.subr.mxu0 0.0
    %253 = vmatpush1.xpose.msra.mxu0 0.0
    %254 = vmatprep.mubr.f32.mxu0 0.0
    %v255 = vand.u32 %v86, 4294901760
    %256 = vmatmul.mubr.f32.gmra.mrb[0].mxu0 %v255
    %v257 = vpop.f32.mrb[0].mxu0
    %v258 = vadd.f32 %v172, %v257
    %v259 = vpop.f32.mrb[0].mxu0
    %260 = vdwg.mxu0
    %261 = vmatprep.subr.mxu0 0.0
    %v262 = vand.u32 %v89, 4294901760
    %v263 = vsub.f32 %v89, %v262
    %264 = vmatpush1.xpose.msra.mxu0 %v263
    %265 = vmatprep.subr.mxu0 0.0
    %v266 = vand.u32 %v92, 4294901760
    %v267 = vsub.f32 %v92, %v266
    %268 = vmatpush1.xpose.msra.mxu0 %v267
    %269 = vmatprep.subr.mxu0 0.0
    %v270 = vand.u32 %v95, 4294901760
    %v271 = vsub.f32 %v95, %v270
    %272 = vmatpush1.xpose.msra.mxu0 %v271
    %273 = vmatprep.subr.mxu0 0.0
    %274 = vmatpush1.xpose.msra.mxu0 0.0
    %275 = vmatprep.subr.mxu0 0.0
    %276 = vmatpush1.xpose.msra.mxu0 0.0
    %277 = vmatprep.subr.mxu0 0.0
    %278 = vmatpush1.xpose.msra.mxu0 0.0
    %279 = vmatprep.subr.mxu0 0.0
    %280 = vmatpush1.xpose.msra.mxu0 0.0
    %281 = vmatprep.subr.mxu0 0.0
    %282 = vmatpush1.xpose.msra.mxu0 0.0
    %283 = vmatprep.subr.mxu0 0.0
    %284 = vmatpush1.xpose.msra.mxu0 0.0
    %285 = vmatprep.subr.mxu0 0.0
    %286 = vmatpush1.xpose.msra.mxu0 0.0
    %287 = vmatprep.subr.mxu0 0.0
    %288 = vmatpush1.xpose.msra.mxu0 0.0
    %289 = vmatprep.subr.mxu0 0.0
    %290 = vmatpush1.xpose.msra.mxu0 0.0
    %291 = vmatprep.subr.mxu0 0.0
    %292 = vmatpush1.xpose.msra.mxu0 0.0
    %293 = vmatprep.subr.mxu0 0.0
    %294 = vmatpush1.xpose.msra.mxu0 0.0
    %295 = vmatprep.subr.mxu0 0.0
    %296 = vmatpush1.xpose.msra.mxu0 0.0
    %297 = vmatprep.subr.mxu0 0.0
    %298 = vmatpush1.xpose.msra.mxu0 0.0
    %299 = vmatprep.subr.mxu0 0.0
    %300 = vmatpush1.xpose.msra.mxu0 0.0
    %301 = vmatprep.subr.mxu0 0.0
    %302 = vmatpush1.xpose.msra.mxu0 0.0
    %303 = vmatprep.subr.mxu0 0.0
    %304 = vmatpush1.xpose.msra.mxu0 0.0
    %305 = vmatprep.subr.mxu0 0.0
    %306 = vmatpush1.xpose.msra.mxu0 0.0
    %307 = vmatprep.subr.mxu0 0.0
    %308 = vmatpush1.xpose.msra.mxu0 0.0
    %309 = vmatprep.subr.mxu0 0.0
    %310 = vmatpush1.xpose.msra.mxu0 0.0
    %311 = vmatprep.subr.mxu0 0.0
    %312 = vmatpush1.xpose.msra.mxu0 0.0
    %313 = vmatprep.subr.mxu0 0.0
    %314 = vmatpush1.xpose.msra.mxu0 0.0
    %315 = vmatprep.subr.mxu0 0.0
    %316 = vmatpush1.xpose.msra.mxu0 0.0
    %317 = vmatprep.subr.mxu0 0.0
    %318 = vmatpush1.xpose.msra.mxu0 0.0
    %319 = vmatprep.subr.mxu0 0.0
    %320 = vmatpush1.xpose.msra.mxu0 0.0
    %321 = vmatprep.subr.mxu0 0.0
    %322 = vmatpush1.xpose.msra.mxu0 0.0
    %323 = vmatprep.subr.mxu0 0.0
    %324 = vmatpush1.xpose.msra.mxu0 0.0
    %325 = vmatprep.subr.mxu0 0.0
    %326 = vmatpush1.xpose.msra.mxu0 0.0
    %327 = vmatprep.subr.mxu0 0.0
    %328 = vmatpush1.xpose.msra.mxu0 0.0
    %329 = vmatprep.subr.mxu0 0.0
    %330 = vmatpush1.xpose.msra.mxu0 0.0
    %331 = vmatprep.mubr.f32.mxu0 0.0
    %v332 = vand.u32 %v86, 4294901760
    %v333 = vsub.f32 %v86, %v332
    %334 = vmatmul.mubr.f32.gmra.mrb[0].mxu0 %v333
    %v335 = vpop.f32.mrb[0].mxu0
    %v336 = vadd.f32 %v258, %v335
    %v337 = vpop.f32.mrb[0].mxu0
    %338 = vdwg.mxu0
    %339 = vmatprep.subr.mxu0 0.0
    %v340 = vand.u32 %v89, 4294901760
    %341 = vmatpush1.xpose.msra.mxu0 %v340
    %342 = vmatprep.subr.mxu0 0.0
    %v343 = vand.u32 %v92, 4294901760
    %344 = vmatpush1.xpose.msra.mxu0 %v343
    %345 = vmatprep.subr.mxu0 0.0
    %v346 = vand.u32 %v95, 4294901760
    %347 = vmatpush1.xpose.msra.mxu0 %v346
    %348 = vmatprep.subr.mxu0 0.0
    %349 = vmatpush1.xpose.msra.mxu0 0.0
    %350 = vmatprep.subr.mxu0 0.0
    %351 = vmatpush1.xpose.msra.mxu0 0.0
    %352 = vmatprep.subr.mxu0 0.0
    %353 = vmatpush1.xpose.msra.mxu0 0.0
    %354 = vmatprep.subr.mxu0 0.0
    %355 = vmatpush1.xpose.msra.mxu0 0.0
    %356 = vmatprep.subr.mxu0 0.0
    %357 = vmatpush1.xpose.msra.mxu0 0.0
    %358 = vmatprep.subr.mxu0 0.0
    %359 = vmatpush1.xpose.msra.mxu0 0.0
    %360 = vmatprep.subr.mxu0 0.0
    %361 = vmatpush1.xpose.msra.mxu0 0.0
    %362 = vmatprep.subr.mxu0 0.0
    %363 = vmatpush1.xpose.msra.mxu0 0.0
    %364 = vmatprep.subr.mxu0 0.0
    %365 = vmatpush1.xpose.msra.mxu0 0.0
    %366 = vmatprep.subr.mxu0 0.0
    %367 = vmatpush1.xpose.msra.mxu0 0.0
    %368 = vmatprep.subr.mxu0 0.0
    %369 = vmatpush1.xpose.msra.mxu0 0.0
    %370 = vmatprep.subr.mxu0 0.0
    %371 = vmatpush1.xpose.msra.mxu0 0.0
    %372 = vmatprep.subr.mxu0 0.0
    %373 = vmatpush1.xpose.msra.mxu0 0.0
    %374 = vmatprep.subr.mxu0 0.0
    %375 = vmatpush1.xpose.msra.mxu0 0.0
    %376 = vmatprep.subr.mxu0 0.0
    %377 = vmatpush1.xpose.msra.mxu0 0.0
    %378 = vmatprep.subr.mxu0 0.0
    %379 = vmatpush1.xpose.msra.mxu0 0.0
    %380 = vmatprep.subr.mxu0 0.0
    %381 = vmatpush1.xpose.msra.mxu0 0.0
    %382 = vmatprep.subr.mxu0 0.0
    %383 = vmatpush1.xpose.msra.mxu0 0.0
    %384 = vmatprep.subr.mxu0 0.0
    %385 = vmatpush1.xpose.msra.mxu0 0.0
    %386 = vmatprep.subr.mxu0 0.0
    %387 = vmatpush1.xpose.msra.mxu0 0.0
    %388 = vmatprep.subr.mxu0 0.0
    %389 = vmatpush1.xpose.msra.mxu0 0.0
    %390 = vmatprep.subr.mxu0 0.0
    %391 = vmatpush1.xpose.msra.mxu0 0.0
    %392 = vmatprep.subr.mxu0 0.0
    %393 = vmatpush1.xpose.msra.mxu0 0.0
    %394 = vmatprep.subr.mxu0 0.0
    %395 = vmatpush1.xpose.msra.mxu0 0.0
    %396 = vmatprep.subr.mxu0 0.0
    %397 = vmatpush1.xpose.msra.mxu0 0.0
    %398 = vmatprep.subr.mxu0 0.0
    %399 = vmatpush1.xpose.msra.mxu0 0.0
    %400 = vmatprep.subr.mxu0 0.0
    %401 = vmatpush1.xpose.msra.mxu0 0.0
    %402 = vmatprep.subr.mxu0 0.0
    %403 = vmatpush1.xpose.msra.mxu0 0.0
    %404 = vmatprep.subr.mxu0 0.0
    %405 = vmatpush1.xpose.msra.mxu0 0.0
    %406 = vmatprep.mubr.f32.mxu0 0.0
    %v407 = vand.u32 %v86, 4294901760
    %v408 = vsub.f32 %v86, %v407
    %v409 = vand.u32 %v408, 4294901760
    %410 = vmatmul.mubr.f32.gmra.mrb[0].mxu0 %v409
    %v411 = vpop.f32.mrb[0].mxu0
    %v412 = vadd.f32 %v336, %v411
    %v413 = vpop.f32.mrb[0].mxu0
    %414 = vdwg.mxu0
    %415 = vmatprep.subr.mxu0 0.0
    %v416 = vand.u32 %v89, 4294901760
    %v417 = vsub.f32 %v89, %v416
    %v418 = vand.u32 %v417, 4294901760
    %419 = vmatpush1.xpose.msra.mxu0 %v418
    %420 = vmatprep.subr.mxu0 0.0
    %v421 = vand.u32 %v92, 4294901760
    %v422 = vsub.f32 %v92, %v421
    %v423 = vand.u32 %v422, 4294901760
    %424 = vmatpush1.xpose.msra.mxu0 %v423
    %425 = vmatprep.subr.mxu0 0.0
    %v426 = vand.u32 %v95, 4294901760
    %v427 = vsub.f32 %v95, %v426
    %v428 = vand.u32 %v427, 4294901760
    %429 = vmatpush1.xpose.msra.mxu0 %v428
    %430 = vmatprep.subr.mxu0 0.0
    %431 = vmatpush1.xpose.msra.mxu0 0.0
    %432 = vmatprep.subr.mxu0 0.0
    %433 = vmatpush1.xpose.msra.mxu0 0.0
    %434 = vmatprep.subr.mxu0 0.0
    %435 = vmatpush1.xpose.msra.mxu0 0.0
    %436 = vmatprep.subr.mxu0 0.0
    %437 = vmatpush1.xpose.msra.mxu0 0.0
    %438 = vmatprep.subr.mxu0 0.0
    %439 = vmatpush1.xpose.msra.mxu0 0.0
    %440 = vmatprep.subr.mxu0 0.0
    %441 = vmatpush1.xpose.msra.mxu0 0.0
    %442 = vmatprep.subr.mxu0 0.0
    %443 = vmatpush1.xpose.msra.mxu0 0.0
    %444 = vmatprep.subr.mxu0 0.0
    %445 = vmatpush1.xpose.msra.mxu0 0.0
    %446 = vmatprep.subr.mxu0 0.0
    %447 = vmatpush1.xpose.msra.mxu0 0.0
    %448 = vmatprep.subr.mxu0 0.0
    %449 = vmatpush1.xpose.msra.mxu0 0.0
    %450 = vmatprep.subr.mxu0 0.0
    %451 = vmatpush1.xpose.msra.mxu0 0.0
    %452 = vmatprep.subr.mxu0 0.0
    %453 = vmatpush1.xpose.msra.mxu0 0.0
    %454 = vmatprep.subr.mxu0 0.0
    %455 = vmatpush1.xpose.msra.mxu0 0.0
    %456 = vmatprep.subr.mxu0 0.0
    %457 = vmatpush1.xpose.msra.mxu0 0.0
    %458 = vmatprep.subr.mxu0 0.0
    %459 = vmatpush1.xpose.msra.mxu0 0.0
    %460 = vmatprep.subr.mxu0 0.0
    %461 = vmatpush1.xpose.msra.mxu0 0.0
    %462 = vmatprep.subr.mxu0 0.0
    %463 = vmatpush1.xpose.msra.mxu0 0.0
    %464 = vmatprep.subr.mxu0 0.0
    %465 = vmatpush1.xpose.msra.mxu0 0.0
    %466 = vmatprep.subr.mxu0 0.0
    %467 = vmatpush1.xpose.msra.mxu0 0.0
    %468 = vmatprep.subr.mxu0 0.0
    %469 = vmatpush1.xpose.msra.mxu0 0.0
    %470 = vmatprep.subr.mxu0 0.0
    %471 = vmatpush1.xpose.msra.mxu0 0.0
    %472 = vmatprep.subr.mxu0 0.0
    %473 = vmatpush1.xpose.msra.mxu0 0.0
    %474 = vmatprep.subr.mxu0 0.0
    %475 = vmatpush1.xpose.msra.mxu0 0.0
    %476 = vmatprep.subr.mxu0 0.0
    %477 = vmatpush1.xpose.msra.mxu0 0.0
    %478 = vmatprep.subr.mxu0 0.0
    %479 = vmatpush1.xpose.msra.mxu0 0.0
    %480 = vmatprep.subr.mxu0 0.0
    %481 = vmatpush1.xpose.msra.mxu0 0.0
    %482 = vmatprep.subr.mxu0 0.0
    %483 = vmatpush1.xpose.msra.mxu0 0.0
    %484 = vmatprep.subr.mxu0 0.0
    %485 = vmatpush1.xpose.msra.mxu0 0.0
    %486 = vmatprep.subr.mxu0 0.0
    %487 = vmatpush1.xpose.msra.mxu0 0.0
    %488 = vmatprep.mubr.f32.mxu0 0.0
    %v489 = vand.u32 %v86, 4294901760
    %490 = vmatmul.mubr.f32.gmra.mrb[0].mxu0 %v489
    %v491 = vpop.f32.mrb[0].mxu0
    %v492 = vadd.f32 %v412, %v491
    %v493 = vpop.f32.mrb[0].mxu0
    %494 = vdwg.mxu0
    %495 = vmatprep.subr.mxu0 0.0
    %v496 = vand.u32 %v89, 4294901760
    %497 = vmatpush1.xpose.msra.mxu0 %v496
    %498 = vmatprep.subr.mxu0 0.0
    %v499 = vand.u32 %v92, 4294901760
    %500 = vmatpush1.xpose.msra.mxu0 %v499
    %501 = vmatprep.subr.mxu0 0.0
    %v502 = vand.u32 %v95, 4294901760
    %503 = vmatpush1.xpose.msra.mxu0 %v502
    %504 = vmatprep.subr.mxu0 0.0
    %505 = vmatpush1.xpose.msra.mxu0 0.0
    %506 = vmatprep.subr.mxu0 0.0
    %507 = vmatpush1.xpose.msra.mxu0 0.0
    %508 = vmatprep.subr.mxu0 0.0
    %509 = vmatpush1.xpose.msra.mxu0 0.0
    %510 = vmatprep.subr.mxu0 0.0
    %511 = vmatpush1.xpose.msra.mxu0 0.0
    %512 = vmatprep.subr.mxu0 0.0
    %513 = vmatpush1.xpose.msra.mxu0 0.0
    %514 = vmatprep.subr.mxu0 0.0
    %515 = vmatpush1.xpose.msra.mxu0 0.0
    %516 = vmatprep.subr.mxu0 0.0
    %517 = vmatpush1.xpose.msra.mxu0 0.0
    %518 = vmatprep.subr.mxu0 0.0
    %519 = vmatpush1.xpose.msra.mxu0 0.0
    %520 = vmatprep.subr.mxu0 0.0
    %521 = vmatpush1.xpose.msra.mxu0 0.0
    %522 = vmatprep.subr.mxu0 0.0
    %523 = vmatpush1.xpose.msra.mxu0 0.0
    %524 = vmatprep.subr.mxu0 0.0
    %525 = vmatpush1.xpose.msra.mxu0 0.0
    %526 = vmatprep.subr.mxu0 0.0
    %527 = vmatpush1.xpose.msra.mxu0 0.0
    %528 = vmatprep.subr.mxu0 0.0
    %529 = vmatpush1.xpose.msra.mxu0 0.0
    %530 = vmatprep.subr.mxu0 0.0
    %531 = vmatpush1.xpose.msra.mxu0 0.0
    %532 = vmatprep.subr.mxu0 0.0
    %533 = vmatpush1.xpose.msra.mxu0 0.0
    %534 = vmatprep.subr.mxu0 0.0
    %535 = vmatpush1.xpose.msra.mxu0 0.0
    %536 = vmatprep.subr.mxu0 0.0
    %537 = vmatpush1.xpose.msra.mxu0 0.0
    %538 = vmatprep.subr.mxu0 0.0
    %539 = vmatpush1.xpose.msra.mxu0 0.0
    %540 = vmatprep.subr.mxu0 0.0
    %541 = vmatpush1.xpose.msra.mxu0 0.0
    %542 = vmatprep.subr.mxu0 0.0
    %543 = vmatpush1.xpose.msra.mxu0 0.0
    %544 = vmatprep.subr.mxu0 0.0
    %545 = vmatpush1.xpose.msra.mxu0 0.0
    %546 = vmatprep.subr.mxu0 0.0
    %547 = vmatpush1.xpose.msra.mxu0 0.0
    %548 = vmatprep.subr.mxu0 0.0
    %549 = vmatpush1.xpose.msra.mxu0 0.0
    %550 = vmatprep.subr.mxu0 0.0
    %551 = vmatpush1.xpose.msra.mxu0 0.0
    %552 = vmatprep.subr.mxu0 0.0
    %553 = vmatpush1.xpose.msra.mxu0 0.0
    %554 = vmatprep.subr.mxu0 0.0
    %555 = vmatpush1.xpose.msra.mxu0 0.0
    %556 = vmatprep.subr.mxu0 0.0
    %557 = vmatpush1.xpose.msra.mxu0 0.0
    %558 = vmatprep.subr.mxu0 0.0
    %559 = vmatpush1.xpose.msra.mxu0 0.0
    %560 = vmatprep.subr.mxu0 0.0
    %561 = vmatpush1.xpose.msra.mxu0 0.0
    %562 = vmatprep.mubr.f32.mxu0 0.0
    %v563 = vand.u32 %v86, 4294901760
    %564 = vmatmul.mubr.f32.gmra.mrb[0].mxu0 %v563
    %v565 = vpop.f32.mrb[0].mxu0
    %v566 = vadd.f32 %v492, %v565
    %v567 = vpop.f32.mrb[0].mxu0
    %568 = vdwg.mxu0
    %v569 = vsub.f32 %v45, %v566
    %v570 = vand.u32 2147483647, %v569
    %v571 = vand.u32 2147483647, %v45
    %v572 = vadd.f32 %v571, 1.0
    %v573 = vrcp.pop %v572
    %v574 = vmul.f32 %v570, %v573
    %v575 = vsel %vm72, %v574, 0.0
    %576 = vadd.xlane.f32.xlu0 %v575
    %v577 = vpop.xlane.xlu0 %576
    %v578 = vrot.slane %v577, 4
    %v579 = vadd.f32 %v577, %v578
    %v580 = vrot.slane %v579, 2
    %v581 = vadd.f32 %v579, %v580
    %v582 = vrot.slane %v581, 1
    %v583 = vadd.f32 %v581, %v582
    %s584 = vtos %v583
    %v585 = vstv %s584
    %v586 = vld [vmem:[#allocation7] sm:$0x1]
    %v587 = vmul.f32 %v69, 0.001875
    %v588 = vmul.f32 %v83, 0.035
    %v589 = vadd.f32 %v587, %v588
    %v590 = vmul.f32 %v585, 0.05
    %v591 = vadd.f32 %v589, %v590
    %v592 = vadd.f32 %v586, %v591
    %vm593 = vcmask 0
    %594 = vst.msk [vmem:[#allocation7] sm:$0x1] %vm593, %v592
    %v595 = vld [vmem:[%s5] sm:$0x1]
    %v596 = vld [vmem:[%s6] sm:$0xff]
    %v598 = vsel %vm53, %v596, 0
    %600 = vmatprep.subr.mxu0 0.0
    %v601 = vand.u32 %v89, 4294901760
    %602 = vmatpush1.xpose.msra.mxu0 %v601
    %603 = vmatprep.subr.mxu0 0.0
    %v604 = vand.u32 %v92, 4294901760
    %605 = vmatpush1.xpose.msra.mxu0 %v604
    %606 = vmatprep.subr.mxu0 0.0
    %v607 = vand.u32 %v95, 4294901760
    %608 = vmatpush1.xpose.msra.mxu0 %v607
    %609 = vmatprep.subr.mxu0 0.0
    %610 = vmatpush1.xpose.msra.mxu0 0.0
    %611 = vmatprep.subr.mxu0 0.0
    %612 = vmatpush1.xpose.msra.mxu0 0.0
    %613 = vmatprep.subr.mxu0 0.0
    %614 = vmatpush1.xpose.msra.mxu0 0.0
    %615 = vmatprep.subr.mxu0 0.0
    %616 = vmatpush1.xpose.msra.mxu0 0.0
    %617 = vmatprep.subr.mxu0 0.0
    %618 = vmatpush1.xpose.msra.mxu0 0.0
    %619 = vmatprep.subr.mxu0 0.0
    %620 = vmatpush1.xpose.msra.mxu0 0.0
    %621 = vmatprep.subr.mxu0 0.0
    %622 = vmatpush1.xpose.msra.mxu0 0.0
    %623 = vmatprep.subr.mxu0 0.0
    %624 = vmatpush1.xpose.msra.mxu0 0.0
    %625 = vmatprep.subr.mxu0 0.0
    %626 = vmatpush1.xpose.msra.mxu0 0.0
    %627 = vmatprep.subr.mxu0 0.0
    %628 = vmatpush1.xpose.msra.mxu0 0.0
    %629 = vmatprep.subr.mxu0 0.0
    %630 = vmatpush1.xpose.msra.mxu0 0.0
    %631 = vmatprep.subr.mxu0 0.0
    %632 = vmatpush1.xpose.msra.mxu0 0.0
    %633 = vmatprep.subr.mxu0 0.0
    %634 = vmatpush1.xpose.msra.mxu0 0.0
    %635 = vmatprep.subr.mxu0 0.0
    %636 = vmatpush1.xpose.msra.mxu0 0.0
    %637 = vmatprep.subr.mxu0 0.0
    %638 = vmatpush1.xpose.msra.mxu0 0.0
    %639 = vmatprep.subr.mxu0 0.0
    %640 = vmatpush1.xpose.msra.mxu0 0.0
    %641 = vmatprep.subr.mxu0 0.0
    %642 = vmatpush1.xpose.msra.mxu0 0.0
    %643 = vmatprep.subr.mxu0 0.0
    %644 = vmatpush1.xpose.msra.mxu0 0.0
    %645 = vmatprep.subr.mxu0 0.0
    %646 = vmatpush1.xpose.msra.mxu0 0.0
    %647 = vmatprep.subr.mxu0 0.0
    %648 = vmatpush1.xpose.msra.mxu0 0.0
    %649 = vmatprep.subr.mxu0 0.0
    %650 = vmatpush1.xpose.msra.mxu0 0.0
    %651 = vmatprep.subr.mxu0 0.0
    %652 = vmatpush1.xpose.msra.mxu0 0.0
    %653 = vmatprep.subr.mxu0 0.0
    %654 = vmatpush1.xpose.msra.mxu0 0.0
    %655 = vmatprep.subr.mxu0 0.0
    %656 = vmatpush1.xpose.msra.mxu0 0.0
    %657 = vmatprep.subr.mxu0 0.0
    %658 = vmatpush1.xpose.msra.mxu0 0.0
    %659 = vmatprep.subr.mxu0 0.0
    %660 = vmatpush1.xpose.msra.mxu0 0.0
    %661 = vmatprep.subr.mxu0 0.0
    %662 = vmatpush1.xpose.msra.mxu0 0.0
    %663 = vmatprep.subr.mxu0 0.0
    %664 = vmatpush1.xpose.msra.mxu0 0.0
    %665 = vmatprep.subr.mxu0 0.0
    %666 = vmatpush1.xpose.msra.mxu0 0.0
    %667 = vmatprep.mubr.f32.mxu0 0.0
    %v668 = vand.u32 %v598, 4294901760
    %v669 = vsub.f32 %v598, %v668
    %v670 = vand.u32 %v669, 4294901760
    %v671 = vsub.f32 %v669, %v670
    %v672 = vand.u32 %v671, 4294901760
    %673 = vmatmul.mubr.f32.gmra.mrb[0].mxu0 %v672
    %v674 = vpop.f32.mrb[0].mxu0
    %v675 = vadd.f32 0.0, %v674
    %v676 = vpop.f32.mrb[0].mxu0
    %677 = vdwg.mxu0
    %678 = vmatprep.subr.mxu0 0.0
    %v679 = vand.u32 %v89, 4294901760
    %v680 = vsub.f32 %v89, %v679
    %v681 = vand.u32 %v680, 4294901760
    %v682 = vsub.f32 %v680, %v681
    %v683 = vand.u32 %v682, 4294901760
    %684 = vmatpush1.xpose.msra.mxu0 %v683
    %685 = vmatprep.subr.mxu0 0.0
    %v686 = vand.u32 %v92, 4294901760
    %v687 = vsub.f32 %v92, %v686
    %v688 = vand.u32 %v687, 4294901760
    %v689 = vsub.f32 %v687, %v688
    %v690 = vand.u32 %v689, 4294901760
    %691 = vmatpush1.xpose.msra.mxu0 %v690
    %692 = vmatprep.subr.mxu0 0.0
    %v693 = vand.u32 %v95, 4294901760
    %v694 = vsub.f32 %v95, %v693
    %v695 = vand.u32 %v694, 4294901760
    %v696 = vsub.f32 %v694, %v695
    %v697 = vand.u32 %v696, 4294901760
    %698 = vmatpush1.xpose.msra.mxu0 %v697
    %699 = vmatprep.subr.mxu0 0.0
    %700 = vmatpush1.xpose.msra.mxu0 0.0
    %701 = vmatprep.subr.mxu0 0.0
    %702 = vmatpush1.xpose.msra.mxu0 0.0
    %703 = vmatprep.subr.mxu0 0.0
    %704 = vmatpush1.xpose.msra.mxu0 0.0
    %705 = vmatprep.subr.mxu0 0.0
    %706 = vmatpush1.xpose.msra.mxu0 0.0
    %707 = vmatprep.subr.mxu0 0.0
    %708 = vmatpush1.xpose.msra.mxu0 0.0
    %709 = vmatprep.subr.mxu0 0.0
    %710 = vmatpush1.xpose.msra.mxu0 0.0
    %711 = vmatprep.subr.mxu0 0.0
    %712 = vmatpush1.xpose.msra.mxu0 0.0
    %713 = vmatprep.subr.mxu0 0.0
    %714 = vmatpush1.xpose.msra.mxu0 0.0
    %715 = vmatprep.subr.mxu0 0.0
    %716 = vmatpush1.xpose.msra.mxu0 0.0
    %717 = vmatprep.subr.mxu0 0.0
    %718 = vmatpush1.xpose.msra.mxu0 0.0
    %719 = vmatprep.subr.mxu0 0.0
    %720 = vmatpush1.xpose.msra.mxu0 0.0
    %721 = vmatprep.subr.mxu0 0.0
    %722 = vmatpush1.xpose.msra.mxu0 0.0
    %723 = vmatprep.subr.mxu0 0.0
    %724 = vmatpush1.xpose.msra.mxu0 0.0
    %725 = vmatprep.subr.mxu0 0.0
    %726 = vmatpush1.xpose.msra.mxu0 0.0
    %727 = vmatprep.subr.mxu0 0.0
    %728 = vmatpush1.xpose.msra.mxu0 0.0
    %729 = vmatprep.subr.mxu0 0.0
    %730 = vmatpush1.xpose.msra.mxu0 0.0
    %731 = vmatprep.subr.mxu0 0.0
    %732 = vmatpush1.xpose.msra.mxu0 0.0
    %733 = vmatprep.subr.mxu0 0.0
    %734 = vmatpush1.xpose.msra.mxu0 0.0
    %735 = vmatprep.subr.mxu0 0.0
    %736 = vmatpush1.xpose.msra.mxu0 0.0
    %737 = vmatprep.subr.mxu0 0.0
    %738 = vmatpush1.xpose.msra.mxu0 0.0
    %739 = vmatprep.subr.mxu0 0.0
    %740 = vmatpush1.xpose.msra.mxu0 0.0
    %741 = vmatprep.subr.mxu0 0.0
    %742 = vmatpush1.xpose.msra.mxu0 0.0
    %743 = vmatprep.subr.mxu0 0.0
    %744 = vmatpush1.xpose.msra.mxu0 0.0
    %745 = vmatprep.subr.mxu0 0.0
    %746 = vmatpush1.xpose.msra.mxu0 0.0
    %747 = vmatprep.subr.mxu0 0.0
    %748 = vmatpush1.xpose.msra.mxu0 0.0
    %749 = vmatprep.subr.mxu0 0.0
    %750 = vmatpush1.xpose.msra.mxu0 0.0
    %751 = vmatprep.subr.mxu0 0.0
    %752 = vmatpush1.xpose.msra.mxu0 0.0
    %753 = vmatprep.subr.mxu0 0.0
    %754 = vmatpush1.xpose.msra.mxu0 0.0
    %755 = vmatprep.subr.mxu0 0.0
    %756 = vmatpush1.xpose.msra.mxu0 0.0
    %757 = vmatprep.mubr.f32.mxu0 0.0
    %v758 = vand.u32 %v598, 4294901760
    %759 = vmatmul.mubr.f32.gmra.mrb[0].mxu0 %v758
    %v760 = vpop.f32.mrb[0].mxu0
    %v761 = vadd.f32 %v675, %v760
    %v762 = vpop.f32.mrb[0].mxu0
    %763 = vdwg.mxu0
    %764 = vmatprep.subr.mxu0 0.0
    %v765 = vand.u32 %v89, 4294901760
    %v766 = vsub.f32 %v89, %v765
    %767 = vmatpush1.xpose.msra.mxu0 %v766
    %768 = vmatprep.subr.mxu0 0.0
    %v769 = vand.u32 %v92, 4294901760
    %v770 = vsub.f32 %v92, %v769
    %771 = vmatpush1.xpose.msra.mxu0 %v770
    %772 = vmatprep.subr.mxu0 0.0
    %v773 = vand.u32 %v95, 4294901760
    %v774 = vsub.f32 %v95, %v773
    %775 = vmatpush1.xpose.msra.mxu0 %v774
    %776 = vmatprep.subr.mxu0 0.0
    %777 = vmatpush1.xpose.msra.mxu0 0.0
    %778 = vmatprep.subr.mxu0 0.0
    %779 = vmatpush1.xpose.msra.mxu0 0.0
    %780 = vmatprep.subr.mxu0 0.0
    %781 = vmatpush1.xpose.msra.mxu0 0.0
    %782 = vmatprep.subr.mxu0 0.0
    %783 = vmatpush1.xpose.msra.mxu0 0.0
    %784 = vmatprep.subr.mxu0 0.0
    %785 = vmatpush1.xpose.msra.mxu0 0.0
    %786 = vmatprep.subr.mxu0 0.0
    %787 = vmatpush1.xpose.msra.mxu0 0.0
    %788 = vmatprep.subr.mxu0 0.0
    %789 = vmatpush1.xpose.msra.mxu0 0.0
    %790 = vmatprep.subr.mxu0 0.0
    %791 = vmatpush1.xpose.msra.mxu0 0.0
    %792 = vmatprep.subr.mxu0 0.0
    %793 = vmatpush1.xpose.msra.mxu0 0.0
    %794 = vmatprep.subr.mxu0 0.0
    %795 = vmatpush1.xpose.msra.mxu0 0.0
    %796 = vmatprep.subr.mxu0 0.0
    %797 = vmatpush1.xpose.msra.mxu0 0.0
    %798 = vmatprep.subr.mxu0 0.0
    %799 = vmatpush1.xpose.msra.mxu0 0.0
    %800 = vmatprep.subr.mxu0 0.0
    %801 = vmatpush1.xpose.msra.mxu0 0.0
    %802 = vmatprep.subr.mxu0 0.0
    %803 = vmatpush1.xpose.msra.mxu0 0.0
    %804 = vmatprep.subr.mxu0 0.0
    %805 = vmatpush1.xpose.msra.mxu0 0.0
    %806 = vmatprep.subr.mxu0 0.0
    %807 = vmatpush1.xpose.msra.mxu0 0.0
    %808 = vmatprep.subr.mxu0 0.0
    %809 = vmatpush1.xpose.msra.mxu0 0.0
    %810 = vmatprep.subr.mxu0 0.0
    %811 = vmatpush1.xpose.msra.mxu0 0.0
    %812 = vmatprep.subr.mxu0 0.0
    %813 = vmatpush1.xpose.msra.mxu0 0.0
    %814 = vmatprep.subr.mxu0 0.0
    %815 = vmatpush1.xpose.msra.mxu0 0.0
    %816 = vmatprep.subr.mxu0 0.0
    %817 = vmatpush1.xpose.msra.mxu0 0.0
    %818 = vmatprep.subr.mxu0 0.0
    %819 = vmatpush1.xpose.msra.mxu0 0.0
    %820 = vmatprep.subr.mxu0 0.0
    %821 = vmatpush1.xpose.msra.mxu0 0.0
    %822 = vmatprep.subr.mxu0 0.0
    %823 = vmatpush1.xpose.msra.mxu0 0.0
    %824 = vmatprep.subr.mxu0 0.0
    %825 = vmatpush1.xpose.msra.mxu0 0.0
    %826 = vmatprep.subr.mxu0 0.0
    %827 = vmatpush1.xpose.msra.mxu0 0.0
    %828 = vmatprep.subr.mxu0 0.0
    %829 = vmatpush1.xpose.msra.mxu0 0.0
    %830 = vmatprep.subr.mxu0 0.0
    %831 = vmatpush1.xpose.msra.mxu0 0.0
    %832 = vmatprep.subr.mxu0 0.0
    %833 = vmatpush1.xpose.msra.mxu0 0.0
    %834 = vmatprep.mubr.f32.mxu0 0.0
    %v835 = vand.u32 %v598, 4294901760
    %v836 = vsub.f32 %v598, %v835
    %837 = vmatmul.mubr.f32.gmra.mrb[0].mxu0 %v836
    %v838 = vpop.f32.mrb[0].mxu0
    %v839 = vadd.f32 %v761, %v838
    %v840 = vpop.f32.mrb[0].mxu0
    %841 = vdwg.mxu0
    %842 = vmatprep.subr.mxu0 0.0
    %v843 = vand.u32 %v89, 4294901760
    %844 = vmatpush1.xpose.msra.mxu0 %v843
    %845 = vmatprep.subr.mxu0 0.0
    %v846 = vand.u32 %v92, 4294901760
    %847 = vmatpush1.xpose.msra.mxu0 %v846
    %848 = vmatprep.subr.mxu0 0.0
    %v849 = vand.u32 %v95, 4294901760
    %850 = vmatpush1.xpose.msra.mxu0 %v849
    %851 = vmatprep.subr.mxu0 0.0
    %852 = vmatpush1.xpose.msra.mxu0 0.0
    %853 = vmatprep.subr.mxu0 0.0
    %854 = vmatpush1.xpose.msra.mxu0 0.0
    %855 = vmatprep.subr.mxu0 0.0
    %856 = vmatpush1.xpose.msra.mxu0 0.0
    %857 = vmatprep.subr.mxu0 0.0
    %858 = vmatpush1.xpose.msra.mxu0 0.0
    %859 = vmatprep.subr.mxu0 0.0
    %860 = vmatpush1.xpose.msra.mxu0 0.0
    %861 = vmatprep.subr.mxu0 0.0
    %862 = vmatpush1.xpose.msra.mxu0 0.0
    %863 = vmatprep.subr.mxu0 0.0
    %864 = vmatpush1.xpose.msra.mxu0 0.0
    %865 = vmatprep.subr.mxu0 0.0
    %866 = vmatpush1.xpose.msra.mxu0 0.0
    %867 = vmatprep.subr.mxu0 0.0
    %868 = vmatpush1.xpose.msra.mxu0 0.0
    %869 = vmatprep.subr.mxu0 0.0
    %870 = vmatpush1.xpose.msra.mxu0 0.0
    %871 = vmatprep.subr.mxu0 0.0
    %872 = vmatpush1.xpose.msra.mxu0 0.0
    %873 = vmatprep.subr.mxu0 0.0
    %874 = vmatpush1.xpose.msra.mxu0 0.0
    %875 = vmatprep.subr.mxu0 0.0
    %876 = vmatpush1.xpose.msra.mxu0 0.0
    %877 = vmatprep.subr.mxu0 0.0
    %878 = vmatpush1.xpose.msra.mxu0 0.0
    %879 = vmatprep.subr.mxu0 0.0
    %880 = vmatpush1.xpose.msra.mxu0 0.0
    %881 = vmatprep.subr.mxu0 0.0
    %882 = vmatpush1.xpose.msra.mxu0 0.0
    %883 = vmatprep.subr.mxu0 0.0
    %884 = vmatpush1.xpose.msra.mxu0 0.0
    %885 = vmatprep.subr.mxu0 0.0
    %886 = vmatpush1.xpose.msra.mxu0 0.0
    %887 = vmatprep.subr.mxu0 0.0
    %888 = vmatpush1.xpose.msra.mxu0 0.0
    %889 = vmatprep.subr.mxu0 0.0
    %890 = vmatpush1.xpose.msra.mxu0 0.0
    %891 = vmatprep.subr.mxu0 0.0
    %892 = vmatpush1.xpose.msra.mxu0 0.0
    %893 = vmatprep.subr.mxu0 0.0
    %894 = vmatpush1.xpose.msra.mxu0 0.0
    %895 = vmatprep.subr.mxu0 0.0
    %896 = vmatpush1.xpose.msra.mxu0 0.0
    %897 = vmatprep.subr.mxu0 0.0
    %898 = vmatpush1.xpose.msra.mxu0 0.0
    %899 = vmatprep.subr.mxu0 0.0
    %900 = vmatpush1.xpose.msra.mxu0 0.0
    %901 = vmatprep.subr.mxu0 0.0
    %902 = vmatpush1.xpose.msra.mxu0 0.0
    %903 = vmatprep.subr.mxu0 0.0
    %904 = vmatpush1.xpose.msra.mxu0 0.0
    %905 = vmatprep.subr.mxu0 0.0
    %906 = vmatpush1.xpose.msra.mxu0 0.0
    %907 = vmatprep.subr.mxu0 0.0
    %908 = vmatpush1.xpose.msra.mxu0 0.0
    %909 = vmatprep.mubr.f32.mxu0 0.0
    %v910 = vand.u32 %v598, 4294901760
    %v911 = vsub.f32 %v598, %v910
    %v912 = vand.u32 %v911, 4294901760
    %913 = vmatmul.mubr.f32.gmra.mrb[0].mxu0 %v912
    %v914 = vpop.f32.mrb[0].mxu0
    %v915 = vadd.f32 %v839, %v914
    %v916 = vpop.f32.mrb[0].mxu0
    %917 = vdwg.mxu0
    %918 = vmatprep.subr.mxu0 0.0
    %v919 = vand.u32 %v89, 4294901760
    %v920 = vsub.f32 %v89, %v919
    %v921 = vand.u32 %v920, 4294901760
    %922 = vmatpush1.xpose.msra.mxu0 %v921
    %923 = vmatprep.subr.mxu0 0.0
    %v924 = vand.u32 %v92, 4294901760
    %v925 = vsub.f32 %v92, %v924
    %v926 = vand.u32 %v925, 4294901760
    %927 = vmatpush1.xpose.msra.mxu0 %v926
    %928 = vmatprep.subr.mxu0 0.0
    %v929 = vand.u32 %v95, 4294901760
    %v930 = vsub.f32 %v95, %v929
    %v931 = vand.u32 %v930, 4294901760
    %932 = vmatpush1.xpose.msra.mxu0 %v931
    %933 = vmatprep.subr.mxu0 0.0
    %934 = vmatpush1.xpose.msra.mxu0 0.0
    %935 = vmatprep.subr.mxu0 0.0
    %936 = vmatpush1.xpose.msra.mxu0 0.0
    %937 = vmatprep.subr.mxu0 0.0
    %938 = vmatpush1.xpose.msra.mxu0 0.0
    %939 = vmatprep.subr.mxu0 0.0
    %940 = vmatpush1.xpose.msra.mxu0 0.0
    %941 = vmatprep.subr.mxu0 0.0
    %942 = vmatpush1.xpose.msra.mxu0 0.0
    %943 = vmatprep.subr.mxu0 0.0
    %944 = vmatpush1.xpose.msra.mxu0 0.0
    %945 = vmatprep.subr.mxu0 0.0
    %946 = vmatpush1.xpose.msra.mxu0 0.0
    %947 = vmatprep.subr.mxu0 0.0
    %948 = vmatpush1.xpose.msra.mxu0 0.0
    %949 = vmatprep.subr.mxu0 0.0
    %950 = vmatpush1.xpose.msra.mxu0 0.0
    %951 = vmatprep.subr.mxu0 0.0
    %952 = vmatpush1.xpose.msra.mxu0 0.0
    %953 = vmatprep.subr.mxu0 0.0
    %954 = vmatpush1.xpose.msra.mxu0 0.0
    %955 = vmatprep.subr.mxu0 0.0
    %956 = vmatpush1.xpose.msra.mxu0 0.0
    %957 = vmatprep.subr.mxu0 0.0
    %958 = vmatpush1.xpose.msra.mxu0 0.0
    %959 = vmatprep.subr.mxu0 0.0
    %960 = vmatpush1.xpose.msra.mxu0 0.0
    %961 = vmatprep.subr.mxu0 0.0
    %962 = vmatpush1.xpose.msra.mxu0 0.0
    %963 = vmatprep.subr.mxu0 0.0
    %964 = vmatpush1.xpose.msra.mxu0 0.0
    %965 = vmatprep.subr.mxu0 0.0
    %966 = vmatpush1.xpose.msra.mxu0 0.0
    %967 = vmatprep.subr.mxu0 0.0
    %968 = vmatpush1.xpose.msra.mxu0 0.0
    %969 = vmatprep.subr.mxu0 0.0
    %970 = vmatpush1.xpose.msra.mxu0 0.0
    %971 = vmatprep.subr.mxu0 0.0
    %972 = vmatpush1.xpose.msra.mxu0 0.0
    %973 = vmatprep.subr.mxu0 0.0
    %974 = vmatpush1.xpose.msra.mxu0 0.0
    %975 = vmatprep.subr.mxu0 0.0
    %976 = vmatpush1.xpose.msra.mxu0 0.0
    %977 = vmatprep.subr.mxu0 0.0
    %978 = vmatpush1.xpose.msra.mxu0 0.0
    %979 = vmatprep.subr.mxu0 0.0
    %980 = vmatpush1.xpose.msra.mxu0 0.0
    %981 = vmatprep.subr.mxu0 0.0
    %982 = vmatpush1.xpose.msra.mxu0 0.0
    %983 = vmatprep.subr.mxu0 0.0
    %984 = vmatpush1.xpose.msra.mxu0 0.0
    %985 = vmatprep.subr.mxu0 0.0
    %986 = vmatpush1.xpose.msra.mxu0 0.0
    %987 = vmatprep.subr.mxu0 0.0
    %988 = vmatpush1.xpose.msra.mxu0 0.0
    %989 = vmatprep.subr.mxu0 0.0
    %990 = vmatpush1.xpose.msra.mxu0 0.0
    %991 = vmatprep.mubr.f32.mxu0 0.0
    %v992 = vand.u32 %v598, 4294901760
    %993 = vmatmul.mubr.f32.gmra.mrb[0].mxu0 %v992
    %v994 = vpop.f32.mrb[0].mxu0
    %v995 = vadd.f32 %v915, %v994
    %v996 = vpop.f32.mrb[0].mxu0
    %997 = vdwg.mxu0
    %998 = vmatprep.subr.mxu0 0.0
    %v999 = vand.u32 %v89, 4294901760
    %1000 = vmatpush1.xpose.msra.mxu0 %v999
    %1001 = vmatprep.subr.mxu0 0.0
    %v1002 = vand.u32 %v92, 4294901760
    %1003 = vmatpush1.xpose.msra.mxu0 %v1002
    %1004 = vmatprep.subr.mxu0 0.0
    %v1005 = vand.u32 %v95, 4294901760
    %1006 = vmatpush1.xpose.msra.mxu0 %v1005
    %1007 = vmatprep.subr.mxu0 0.0
    %1008 = vmatpush1.xpose.msra.mxu0 0.0
    %1009 = vmatprep.subr.mxu0 0.0
    %1010 = vmatpush1.xpose.msra.mxu0 0.0
    %1011 = vmatprep.subr.mxu0 0.0
    %1012 = vmatpush1.xpose.msra.mxu0 0.0
    %1013 = vmatprep.subr.mxu0 0.0
    %1014 = vmatpush1.xpose.msra.mxu0 0.0
    %1015 = vmatprep.subr.mxu0 0.0
    %1016 = vmatpush1.xpose.msra.mxu0 0.0
    %1017 = vmatprep.subr.mxu0 0.0
    %1018 = vmatpush1.xpose.msra.mxu0 0.0
    %1019 = vmatprep.subr.mxu0 0.0
    %1020 = vmatpush1.xpose.msra.mxu0 0.0
    %1021 = vmatprep.subr.mxu0 0.0
    %1022 = vmatpush1.xpose.msra.mxu0 0.0
    %1023 = vmatprep.subr.mxu0 0.0
    %1024 = vmatpush1.xpose.msra.mxu0 0.0
    %1025 = vmatprep.subr.mxu0 0.0
    %1026 = vmatpush1.xpose.msra.mxu0 0.0
    %1027 = vmatprep.subr.mxu0 0.0
    %1028 = vmatpush1.xpose.msra.mxu0 0.0
    %1029 = vmatprep.subr.mxu0 0.0
    %1030 = vmatpush1.xpose.msra.mxu0 0.0
    %1031 = vmatprep.subr.mxu0 0.0
    %1032 = vmatpush1.xpose.msra.mxu0 0.0
    %1033 = vmatprep.subr.mxu0 0.0
    %1034 = vmatpush1.xpose.msra.mxu0 0.0
    %1035 = vmatprep.subr.mxu0 0.0
    %1036 = vmatpush1.xpose.msra.mxu0 0.0
    %1037 = vmatprep.subr.mxu0 0.0
    %1038 = vmatpush1.xpose.msra.mxu0 0.0
    %1039 = vmatprep.subr.mxu0 0.0
    %1040 = vmatpush1.xpose.msra.mxu0 0.0
    %1041 = vmatprep.subr.mxu0 0.0
    %1042 = vmatpush1.xpose.msra.mxu0 0.0
    %1043 = vmatprep.subr.mxu0 0.0
    %1044 = vmatpush1.xpose.msra.mxu0 0.0
    %1045 = vmatprep.subr.mxu0 0.0
    %1046 = vmatpush1.xpose.msra.mxu0 0.0
    %1047 = vmatprep.subr.mxu0 0.0
    %1048 = vmatpush1.xpose.msra.mxu0 0.0
    %1049 = vmatprep.subr.mxu0 0.0
    %1050 = vmatpush1.xpose.msra.mxu0 0.0
    %1051 = vmatprep.subr.mxu0 0.0
    %1052 = vmatpush1.xpose.msra.mxu0 0.0
    %1053 = vmatprep.subr.mxu0 0.0
    %1054 = vmatpush1.xpose.msra.mxu0 0.0
    %1055 = vmatprep.subr.mxu0 0.0
    %1056 = vmatpush1.xpose.msra.mxu0 0.0
    %1057 = vmatprep.subr.mxu0 0.0
    %1058 = vmatpush1.xpose.msra.mxu0 0.0
    %1059 = vmatprep.subr.mxu0 0.0
    %1060 = vmatpush1.xpose.msra.mxu0 0.0
    %1061 = vmatprep.subr.mxu0 0.0
    %1062 = vmatpush1.xpose.msra.mxu0 0.0
    %1063 = vmatprep.subr.mxu0 0.0
    %1064 = vmatpush1.xpose.msra.mxu0 0.0
    %1065 = vmatprep.mubr.f32.mxu0 0.0
    %v1066 = vand.u32 %v598, 4294901760
    %1067 = vmatmul.mubr.f32.gmra.mrb[0].mxu0 %v1066
    %v1068 = vpop.f32.mrb[0].mxu0
    %v1069 = vadd.f32 %v995, %v1068
    %v1070 = vpop.f32.mrb[0].mxu0
    %1071 = vdwg.mxu0
    %v1072 = vadd.f32 %v595, 1e-06
    %v1074 = vlaneseq
    %v1075 = vshrl.u32 %v1074, 7
    %v1076 = vsub.s32 0, %v1075
    %v1077 = vrot.slane %v1072, %v1076
    %v1079 = vrcp.pop %v1077
    %v1080 = vmul.f32 %v1069, %v1079
    %v1081 = vmul.f32 %v1080, %v1080
    %v1082 = vld [vmem:[#allocation2] sm:$0xff]
    %vm1083 = vcmask 162816
    %v1084 = vsel %vm1083, %v1080, 0.0
    %1085 = vadd.xlane.f32.xlu0 %v1084
    %v1086 = vpop.xlane.xlu0 %1085
    %v1087 = vadd.f32 %v1082, %v1086
    %vm1088 = vcmask 7168
    %1089 = vst.msk [vmem:[#allocation2] sm:$0xff] %vm1088, %v1087
    %v1090 = vld [vmem:[#allocation3] sm:$0xff]
    %v1091 = vsel %vm1083, %v1081, 0.0
    %1092 = vadd.xlane.f32.xlu0 %v1091
    %v1093 = vpop.xlane.xlu0 %1092
    %v1094 = vadd.f32 %v1090, %v1093
    %1095 = vst.msk [vmem:[#allocation3] sm:$0xff] %vm1088, %v1094
    %1097 = vrot.lane.b32.xlu0 %v1069, 1
    %v1098 = vpop.permute.xlu0 %1097
    %v1100 = vsub.f32 %v1069, %v1098
    %1102 = vrot.lane.b32.xlu0 %v595, 1
    %v1103 = vpop.permute.xlu0 %1102
    %v1105 = vsub.f32 %v595, %v1103
    %v1107 = vlaneseq
    %v1108 = vshrl.u32 %v1107, 7
    %v1109 = vsub.s32 0, %v1108
    %v1110 = vrot.slane %v1105, %v1109
    %v1112 = vmul.f32 %v1100, %v1110
    %v1113 = vsub.f32 0.0, %v1112
    %v1114 = vmax.f32 %v1113, 0.0
    %v1115 = vld [vmem:[#allocation4] sm:$0xff]
    %1117 = vrot.lane.b32.xlu0 %v1114, 127
    %v1118 = vpop.permute.xlu0 %1117
    %vm1120 = vcmask 154624
    %v1121 = vsel %vm1120, %v1118, 0.0
    %1122 = vadd.xlane.f32.xlu0 %v1121
    %v1123 = vpop.xlane.xlu0 %1122
    %v1124 = vadd.f32 %v1115, %v1123
    %1125 = vst.msk [vmem:[#allocation4] sm:$0xff] %vm1088, %v1124
    %v1126 = vld [vmem:[#allocation5] sm:$0xff]
    %v1127 = vsub.f32 %v1069, %v1126
    %v1128 = vld [vmem:[#allocation6] sm:$0x1]
    %v1129 = vsub.f32 %v595, %v1128
    %v1131 = vlaneseq
    %v1132 = vshrl.u32 %v1131, 7
    %v1133 = vsub.s32 0, %v1132
    %v1134 = vrot.slane %v1129, %v1133
    %v1136 = vmul.f32 %v1127, %v1134
    %v1137 = vsub.f32 0.0, %v1136
    %v1138 = vmax.f32 %v1137, 0.0
    %p1139 = scmp.gt.s32.totalorder 0, 0
    // Predicated region
    $region34: #{physics_constrained_loss.1} parent=1 // pred_check
      %p1140 = pneg %p1139
    $region35: #{physics_constrained_loss.1} parent=1 // pred_check_branch
      %1142 = sbr.rel (%p1140) target = $region37
    $region36: #{physics_constrained_loss.1} parent=1 // pred_region
      %v1143 = vld [vmem:[#allocation4] sm:$0xff]
      %v1144 = vadd.f32 %v1143, %v1138
      %1145 = vst.msk [vmem:[#allocation4] sm:$0xff] %vm1088, %v1144
    $region37: #{physics_constrained_loss.1} parent=1 // pred_fallthru
      _
    %1146 = vrot.lane.b32.xlu0 %v1069, 109
    %v1147 = vpop.permute.xlu0 %1146
    %1149 = vst.msk [vmem:[#allocation5] sm:$0xff] %vm1088, %v1147
    %v1150 = vlaneseq
    %v1151 = vshrl.u32 %v1150, 7
    %v1152 = vsub.s32 0, %v1151
    %v1153 = vrot.slane %v595, %v1152
    %1154 = vrot.lane.b32.xlu0 %v1153, 109
    %v1155 = vpop.permute.xlu0 %1154
    %1157 = vst.msk [vmem:[#allocation6] sm:$0x1] %vm593, %v1155
    // Predicated region
    $region38: #{physics_constrained_loss.1} parent=1 // pred_check
      %p1158 = pneg %p27
    $region39: #{physics_constrained_loss.1} parent=1 // pred_check_branch
      %1160 = sbr.rel (%p1158) target = $region41
    $region40: #{physics_constrained_loss.1} parent=1 // pred_region
      %v1161 = vld [vmem:[#allocation2] sm:$0xff]
      %v1162 = vrcp.pop 20.0
      %v1163 = vmul.f32 %v1161, %v1162
      %v1164 = vld [vmem:[#allocation3] sm:$0xff]
      %v1165 = vmul.f32 %v1164, %v1162
      %v1166 = vmul.f32 %v1163, %v1163
      %v1167 = vsub.f32 %v1165, %v1166
      %v1168 = vadd.f32 %v1163, 1e-06
      %v1169 = vrcp.pop %v1168
      %v1170 = vmul.f32 %v1167, %v1169
      %v1171 = vld [vmem:[#allocation4] sm:$0xff]
      %v1172 = vrcp.pop 19.0
      %v1173 = vmul.f32 %v1171, %v1172
      %v1174 = vadd.f32 %v1170, %v1173
      %v1175 = vsel %vm1088, %v1174, 0.0
      %1176 = vadd.xlane.f32.xlu0 %v1175
      %v1177 = vpop.xlane.xlu0 %1176
      %v1178 = vrot.slane %v1177, 4
      %v1179 = vadd.f32 %v1177, %v1178
      %v1180 = vrot.slane %v1179, 2
      %v1181 = vadd.f32 %v1179, %v1180
      %v1182 = vrot.slane %v1181, 1
      %v1183 = vadd.f32 %v1181, %v1182
      %s1184 = vtos %v1183
      %v1185 = vstv %s1184
      %v1186 = vmul.f32 %v1185, 1.5
      %v1187 = vld [vmem:[#allocation7] sm:$0x1]
      %v1188 = vadd.f32 %v1187, %v1186
      %1189 = vst.msk [vmem:[#allocation7] sm:$0x1] %vm593, %v1188
    $region41: #{physics_constrained_loss.1} parent=1 // pred_fallthru
      _
    // Predicated region
    $region42: #{physics_constrained_loss.1} parent=1 // pred_check
      _
    $region43: #{physics_constrained_loss.1} parent=1 // pred_check_branch
      %1191 = sbr.rel (0) target = $region45
    $region44: #{physics_constrained_loss.1} parent=1 // pred_region
      %s1193 = ssub.s32 16, 16
      %1194 = vsyncadd [#allocation8], %s1193
      %s1196 = sshll.u32 [#allocation7], 4
      %s1197 = int_to_ptr.vmem [resolvable:$true] %s1196
      %1199 = dma.vmem_to_hbm [thread:$0]  %s1197, 16, %s7, [#allocation8]
    $region45: #{physics_constrained_loss.1} parent=1 // pred_fallthru
      _
    // Predicated region
    $region46: #{physics_constrained_loss.1} parent=1 // pred_check
      _
    $region47: #{physics_constrained_loss.1} parent=1 // pred_check_branch
      %1201 = sbr.rel (0) target = $region49
    $region48: #{physics_constrained_loss.1} parent=1 // pred_region
      %1202 = dma.done [#allocation8], 16
    $region49: #{physics_constrained_loss.1} parent=1 // pred_fallthru
      _
    %1203 = vsyncpa [#allocation8], 1

</llo_original>
